<compile_context>
chip_gen: v6e
topology: v6e:2x2x1
jax: 0.10.0
libtpu: 0.0.40
codegen_flags: <defaults>
</compile_context>

<pallas_src>
import jax
import jax.numpy as jnp
from jax.experimental import pallas as pl
from jax.experimental.pallas import tpu as pltpu


def se_block_kernel(x_ref, w1t_ref, w2t_ref, wc1_ref, b1_ref, wc2_ref, b2_ref,
                    o_ref):
    # x_ref: (B, C, HW) f32   (flattened NCHW, no wrapper transpose)
    # o_ref: (B, Cout, HW) f32
    B, C, HW = x_ref.shape
    Cout = o_ref.shape[1]

    x = x_ref[...]                                            # (B, C, HW) f32

    # --- squeeze: global average pool over spatial dims (lane reduction, f32) ---
    pooled = jnp.mean(x, axis=2)                              # (B, C) f32

    # --- excitation MLP, batched over B, all f32 (tiny) --------------------------
    h = jnp.dot(pooled, w1t_ref[...], preferred_element_type=jnp.float32)   # (B, Cr)
    h = jnp.maximum(h, 0.0)
    g = jnp.dot(h, w2t_ref[...], preferred_element_type=jnp.float32)        # (B, C)
    gate = jax.nn.sigmoid(g)                                  # (B, C) f32

    # --- scale + NCHW -> channels-last, flattened to (B*HW, C) -------------------
    # B is small and static, so use unrolled, tile-aligned 2-D transposes.
    rows = []
    for b in range(B):
        xb_t = x[b].T                                         # (HW, C) 2-D transpose
        rows.append(xb_t * gate[b:b + 1, :])                  # gate broadcast over HW
    xs = jnp.concatenate(rows, axis=0).astype(jnp.bfloat16)   # (B*HW, C) bf16

    # --- out head: 1x1 conv -> ReLU -> 1x1 conv (Cout padded to Cp=128 lanes) ----
    t = jnp.dot(xs, wc1_ref[...], preferred_element_type=jnp.float32)       # (B*HW, Cp)
    t = jnp.maximum(t + b1_ref[...], 0.0).astype(jnp.bfloat16)
    out = jnp.dot(t, wc2_ref[...], preferred_element_type=jnp.float32)      # (B*HW, Cp)
    out = out + b2_ref[...]

    # --- back to NCHW and store: HW (multiple of 128) on the lane axis -----------
    for b in range(B):
        ob = out[b * HW:(b + 1) * HW, :].T                    # (Cp, HW), tile aligned
        o_ref[b] = ob[:Cout, :].astype(o_ref.dtype)           # keep real channels


def se_block_forward(x_nchw, params):
    """x_nchw: (B, C, H, W) float32.  Returns (B, Cout, H, W) float32."""
    B, C, H, W = x_nchw.shape
    HW = H * W
    w1t, w2t, wc1, b1, wc2, b2 = params
    Cout = wc1.shape[1]
    Cr = w1t.shape[1]
    Cp = ((Cout + 127) // 128) * 128                          # lane-dense padded width

    # NCHW -> (B, C, HW): pure reshape, no HBM transpose.
    x = x_nchw.reshape(B, C, HW)

    # One-time weight prep: pad conv weights/biases to Cp output channels,
    # cast conv weights to bf16 (f32 accumulation happens in the kernel).
    wc1p = jnp.zeros((C, Cp), jnp.bfloat16).at[:, :Cout].set(wc1.astype(jnp.bfloat16))
    b1p = jnp.zeros((1, Cp), jnp.float32).at[:, :Cout].set(b1)
    wc2p = jnp.zeros((Cp, Cp), jnp.bfloat16).at[:Cout, :Cout].set(wc2.astype(jnp.bfloat16))
    b2p = jnp.zeros((1, Cp), jnp.float32).at[:, :Cout].set(b2)

    full3 = lambda i: (0, 0, 0)
    full2 = lambda i: (0, 0)

    flops = (2 * B * HW * (C * Cp + Cp * Cp)        # two 1x1 convs
             + 2 * B * (C * Cr + Cr * C)            # excitation MLP
             + 2 * B * C * HW)                      # pool + scale
    bytes_accessed = 4 * (B * C * HW + B * Cout * HW) + 2 * (C * Cp + Cp * Cp) + 4 * 2 * Cp
    cost = pl.CostEstimate(flops=int(flops), transcendentals=int(B * C),
                           bytes_accessed=int(bytes_accessed))

    out = pl.pallas_call(
        se_block_kernel,
        out_shape=jax.ShapeDtypeStruct((B, Cout, HW), jnp.float32),
        grid_spec=pltpu.PrefetchScalarGridSpec(
            num_scalar_prefetch=0,
            grid=(1,),                                        # single step: no per-step overhead
            in_specs=[
                pl.BlockSpec((B, C, HW), full3),              # x, whole batch in one block
                pl.BlockSpec(w1t.shape, full2),               # fc[0].weight.T  (C, Cr)
                pl.BlockSpec(w2t.shape, full2),               # fc[2].weight.T  (Cr, C)
                pl.BlockSpec(wc1p.shape, full2),              # conv1 weight (C, Cp) bf16
                pl.BlockSpec(b1p.shape, full2),               # conv1 bias   (1, Cp)
                pl.BlockSpec(wc2p.shape, full2),              # conv2 weight (Cp, Cp) bf16
                pl.BlockSpec(b2p.shape, full2),               # conv2 bias   (1, Cp)
            ],
            out_specs=pl.BlockSpec((B, Cout, HW), full3),
        ),
        compiler_params=pltpu.CompilerParams(
            dimension_semantics=("arbitrary",)),
        cost_estimate=cost,
    )(x, w1t, w2t, wc1p, b1p, wc2p, b2p)

    # (B, Cout, HW) -> NCHW: pure reshape.
    return out.reshape(B, Cout, H, W)


def make_params(key, C, Cout, ratio=16):
    Cr = C // ratio
    ks = jax.random.split(key, 6)
    # PyTorch Linear weight shape is (out, in); stored transposed for matmul.
    w1t = jax.random.normal(ks[0], (C, Cr), jnp.float32) * 0.1   # fc[0].weight.T
    w2t = jax.random.normal(ks[1], (Cr, C), jnp.float32) * 0.1   # fc[2].weight.T
    # 1x1 Conv2d weight (Cout, Cin, 1, 1) -> stored as (Cin, Cout)
    wc1 = jax.random.normal(ks[2], (C, Cout), jnp.float32) * 0.1
    b1 = jax.random.normal(ks[3], (1, Cout), jnp.float32) * 0.1
    wc2 = jax.random.normal(ks[4], (Cout, Cout), jnp.float32) * 0.1
    b2 = jax.random.normal(ks[5], (1, Cout), jnp.float32) * 0.1
    return (w1t, w2t, wc1, b1, wc2, b2)


def se_block_ref(x_nchw, params):
    """Pure-JAX f32 reference matching the PyTorch forward semantics."""
    w1t, w2t, wc1, b1, wc2, b2 = params
    y = jnp.mean(x_nchw, axis=(2, 3))                        # (B, C)
    y = jnp.maximum(y @ w1t, 0.0)
    y = jax.nn.sigmoid(y @ w2t)                              # (B, C)
    xs = x_nchw * y[:, :, None, None]
    xs = jnp.transpose(xs, (0, 2, 3, 1))                     # (B, H, W, C)
    t = jnp.maximum(xs @ wc1 + b1[0], 0.0)
    out = t @ wc2 + b2[0]
    return jnp.transpose(out, (0, 3, 1, 2))


if __name__ == "__main__":
    key = jax.random.PRNGKey(0)
    kx, kp = jax.random.split(key)

    B, C, H, W = 2, 32, 16, 16    # input_channel=32, ratio=16 -> hidden=2, HW=256
    Cout = 16                     # output_channel=16
    x = jax.random.normal(kx, (B, C, H, W), jnp.float32)
    params = make_params(kp, C, Cout, ratio=16)

    out = se_block_forward(x, params)
    out = jax.block_until_ready(out)

    ref = se_block_ref(x, params)
    assert out.shape == (B, Cout, H, W)
    max_err = float(jnp.max(jnp.abs(out - ref)))
    # bf16 matmul inputs with f32 accumulation -> small tolerance vs. pure-f32 reference.
    assert jnp.allclose(out, ref, atol=2e-2, rtol=2e-2), f"mismatch vs reference (max abs err {max_err})"

    print("KERNEL_OK")
</pallas_src>

<mosaic_0001>
module attributes {stable_mosaic.version = 11 : i64} {
  func.func @se_block_kernel(%arg0: i32, %arg1: memref<2x32x256xf32, #tpu.memory_space<vmem>>, %arg2: memref<32x2xf32, #tpu.memory_space<vmem>>, %arg3: memref<2x32xf32, #tpu.memory_space<vmem>>, %arg4: memref<32x128xbf16, #tpu.memory_space<vmem>>, %arg5: memref<1x128xf32, #tpu.memory_space<vmem>>, %arg6: memref<128x128xbf16, #tpu.memory_space<vmem>>, %arg7: memref<1x128xf32, #tpu.memory_space<vmem>>, %arg8: memref<2x16x256xf32, #tpu.memory_space<vmem>>) attributes {dimension_semantics = [#tpu.dimension_semantics<arbitrary>], iteration_bounds = array<i64: 1>, scalar_prefetch = 0 : i64, scratch_operands = 0 : i64, tpu.core_type = #tpu.core_type<tc>, window_params = [{pipeline_mode = #tpu.pipeline_mode<synchronous>, transform_indices = @transform_0, window_bounds = array<i64: 2, 32, 256>}, {pipeline_mode = #tpu.pipeline_mode<synchronous>, transform_indices = @transform_1, window_bounds = array<i64: 32, 2>}, {pipeline_mode = #tpu.pipeline_mode<synchronous>, transform_indices = @transform_2, window_bounds = array<i64: 2, 32>}, {pipeline_mode = #tpu.pipeline_mode<synchronous>, transform_indices = @transform_3, window_bounds = array<i64: 32, 128>}, {pipeline_mode = #tpu.pipeline_mode<synchronous>, transform_indices = @transform_4, window_bounds = array<i64: 1, 128>}, {pipeline_mode = #tpu.pipeline_mode<synchronous>, transform_indices = @transform_5, window_bounds = array<i64: 128, 128>}, {pipeline_mode = #tpu.pipeline_mode<synchronous>, transform_indices = @transform_6, window_bounds = array<i64: 1, 128>}, {pipeline_mode = #tpu.pipeline_mode<synchronous>, transform_indices = @transform_7, window_bounds = array<i64: 2, 16, 256>}]} {
    %c0 = arith.constant 0 : index
    %c0_0 = arith.constant 0 : index
    %c0_1 = arith.constant 0 : index
    %0 = vector.load %arg1[%c0, %c0_0, %c0_1] : memref<2x32x256xf32, #tpu.memory_space<vmem>>, vector<2x32x256xf32>
    %cst = arith.constant dense<0.000000e+00> : vector<2x32xf32>
    %1 = vector.multi_reduction <add>, %0, %cst [2] : vector<2x32x256xf32> to vector<2x32xf32>
    %cst_2 = arith.constant 2.560000e+02 : f32
    %2 = vector.broadcast %cst_2 : f32 to vector<2x32xf32>
    %3 = arith.divf %1, %2 : vector<2x32xf32>
    %c0_3 = arith.constant 0 : index
    %c0_4 = arith.constant 0 : index
    %4 = vector.load %arg2[%c0_3, %c0_4] : memref<32x2xf32, #tpu.memory_space<vmem>>, vector<32x2xf32>
    %cst_5 = arith.constant dense<0.000000e+00> : vector<2x2xf32>
    %5 = tpu.matmul %3, %4, %cst_5 {dimension_numbers = #tpu.dot_dimension_numbers<[1], [0], [0], [1], [0, 0, 1, 1], [], []>} : vector<2x32xf32>, vector<32x2xf32>, vector<2x2xf32> -> vector<2x2xf32>
    %cst_6 = arith.constant 0.000000e+00 : f32
    %6 = vector.broadcast %cst_6 : f32 to vector<2x2xf32>
    %7 = arith.maximumf %5, %6 : vector<2x2xf32>
    %c0_7 = arith.constant 0 : index
    %c0_8 = arith.constant 0 : index
    %8 = vector.load %arg3[%c0_7, %c0_8] : memref<2x32xf32, #tpu.memory_space<vmem>>, vector<2x32xf32>
    %cst_9 = arith.constant dense<0.000000e+00> : vector<2x32xf32>
    %9 = tpu.matmul %7, %8, %cst_9 {dimension_numbers = #tpu.dot_dimension_numbers<[1], [0], [0], [1], [0, 0, 1, 1], [], []>} : vector<2x2xf32>, vector<2x32xf32>, vector<2x32xf32> -> vector<2x32xf32>
    %10 = arith.negf %9 : vector<2x32xf32>
    %11 = math.exp %10 : vector<2x32xf32>
    %cst_10 = arith.constant 1.000000e+00 : f32
    %12 = vector.broadcast %cst_10 : f32 to vector<2x32xf32>
    %13 = arith.addf %12, %11 : vector<2x32xf32>
    %14 = arith.divf %12, %13 : vector<2x32xf32>
    %15 = vector.extract_strided_slice %0 {offsets = [0, 0, 0], sizes = [1, 32, 256], strides = [1, 1, 1]} : vector<2x32x256xf32> to vector<1x32x256xf32>
    %16 = vector.shape_cast %15 : vector<1x32x256xf32> to vector<32x256xf32>
    %17 = tpu.transpose %16, [1, 0] : vector<32x256xf32> -> vector<256x32xf32>
    %18 = vector.extract_strided_slice %14 {offsets = [0, 0], sizes = [1, 32], strides = [1, 1]} : vector<2x32xf32> to vector<1x32xf32>
    %19 = vector.broadcast %18 : vector<1x32xf32> to vector<256x32xf32>
    %20 = arith.mulf %17, %19 : vector<256x32xf32>
    %21 = vector.extract_strided_slice %0 {offsets = [1, 0, 0], sizes = [1, 32, 256], strides = [1, 1, 1]} : vector<2x32x256xf32> to vector<1x32x256xf32>
    %22 = vector.shape_cast %21 : vector<1x32x256xf32> to vector<32x256xf32>
    %23 = tpu.transpose %22, [1, 0] : vector<32x256xf32> -> vector<256x32xf32>
    %24 = vector.extract_strided_slice %14 {offsets = [1, 0], sizes = [1, 32], strides = [1, 1]} : vector<2x32xf32> to vector<1x32xf32>
    %25 = vector.broadcast %24 : vector<1x32xf32> to vector<256x32xf32>
    %26 = arith.mulf %23, %25 : vector<256x32xf32>
    %27 = tpu.concatenate %20, %26 in 0 : vector<256x32xf32>, vector<256x32xf32> -> vector<512x32xf32>
    %28 = arith.truncf %27 : vector<512x32xf32> to vector<512x32xbf16>
    %c0_11 = arith.constant 0 : index
    %c0_12 = arith.constant 0 : index
    %29 = vector.load %arg4[%c0_11, %c0_12] : memref<32x128xbf16, #tpu.memory_space<vmem>>, vector<32x128xbf16>
    %cst_13 = arith.constant dense<0.000000e+00> : vector<512x128xf32>
    %30 = tpu.matmul %28, %29, %cst_13 {dimension_numbers = #tpu.dot_dimension_numbers<[1], [0], [0], [1], [0, 0, 1, 1], [], []>} : vector<512x32xbf16>, vector<32x128xbf16>, vector<512x128xf32> -> vector<512x128xf32>
    %c0_14 = arith.constant 0 : index
    %c0_15 = arith.constant 0 : index
    %31 = vector.load %arg5[%c0_14, %c0_15] : memref<1x128xf32, #tpu.memory_space<vmem>>, vector<1x128xf32>
    %32 = vector.broadcast %31 : vector<1x128xf32> to vector<512x128xf32>
    %33 = arith.addf %30, %32 : vector<512x128xf32>
    %cst_16 = arith.constant 0.000000e+00 : f32
    %34 = vector.broadcast %cst_16 : f32 to vector<512x128xf32>
    %35 = arith.maximumf %33, %34 : vector<512x128xf32>
    %36 = arith.truncf %35 : vector<512x128xf32> to vector<512x128xbf16>
    %c0_17 = arith.constant 0 : index
    %c0_18 = arith.constant 0 : index
    %37 = vector.load %arg6[%c0_17, %c0_18] : memref<128x128xbf16, #tpu.memory_space<vmem>>, vector<128x128xbf16>
    %cst_19 = arith.constant dense<0.000000e+00> : vector<512x128xf32>
    %38 = tpu.matmul %36, %37, %cst_19 {dimension_numbers = #tpu.dot_dimension_numbers<[1], [0], [0], [1], [0, 0, 1, 1], [], []>} : vector<512x128xbf16>, vector<128x128xbf16>, vector<512x128xf32> -> vector<512x128xf32>
    %c0_20 = arith.constant 0 : index
    %c0_21 = arith.constant 0 : index
    %39 = vector.load %arg7[%c0_20, %c0_21] : memref<1x128xf32, #tpu.memory_space<vmem>>, vector<1x128xf32>
    %40 = vector.broadcast %39 : vector<1x128xf32> to vector<512x128xf32>
    %41 = arith.addf %38, %40 : vector<512x128xf32>
    %42 = vector.extract_strided_slice %41 {offsets = [0, 0], sizes = [256, 128], strides = [1, 1]} : vector<512x128xf32> to vector<256x128xf32>
    %43 = tpu.transpose %42, [1, 0] : vector<256x128xf32> -> vector<128x256xf32>
    %44 = vector.extract_strided_slice %43 {offsets = [0, 0], sizes = [16, 256], strides = [1, 1]} : vector<128x256xf32> to vector<16x256xf32>
    %c0_22 = arith.constant 0 : index
    %c0_23 = arith.constant 0 : index
    %c0_24 = arith.constant 0 : index
    %45 = vector.load %arg8[%c0_22, %c0_23, %c0_24] : memref<2x16x256xf32, #tpu.memory_space<vmem>>, vector<1x16x256xf32>
    %46 = vector.shape_cast %45 : vector<1x16x256xf32> to vector<16x256xf32>
    %47 = vector.shape_cast %44 : vector<16x256xf32> to vector<1x16x256xf32>
    tpu.vector_store %arg8[%c0_22, %c0_23, %c0_24], %47 {strides = array<i32>} : memref<2x16x256xf32, #tpu.memory_space<vmem>>, vector<1x16x256xf32>,
    %48 = vector.extract_strided_slice %41 {offsets = [256, 0], sizes = [256, 128], strides = [1, 1]} : vector<512x128xf32> to vector<256x128xf32>
    %49 = tpu.transpose %48, [1, 0] : vector<256x128xf32> -> vector<128x256xf32>
    %50 = vector.extract_strided_slice %49 {offsets = [0, 0], sizes = [16, 256], strides = [1, 1]} : vector<128x256xf32> to vector<16x256xf32>
    %c1 = arith.constant 1 : index
    %c0_25 = arith.constant 0 : index
    %c0_26 = arith.constant 0 : index
    %51 = vector.load %arg8[%c1, %c0_25, %c0_26] : memref<2x16x256xf32, #tpu.memory_space<vmem>>, vector<1x16x256xf32>
    %52 = vector.shape_cast %51 : vector<1x16x256xf32> to vector<16x256xf32>
    %53 = vector.shape_cast %50 : vector<16x256xf32> to vector<1x16x256xf32>
    tpu.vector_store %arg8[%c1, %c0_25, %c0_26], %53 {strides = array<i32>} : memref<2x16x256xf32, #tpu.memory_space<vmem>>, vector<1x16x256xf32>,
    return
  }
  func.func @transform_0(%arg0: i32) -> (i32, i32, i32) {
    %c0_i32 = arith.constant 0 : i32
    %c0_i32_0 = arith.constant 0 : i32
    %c0_i32_1 = arith.constant 0 : i32
    %c0_i32_2 = arith.constant 0 : i32
    return %c0_i32, %c0_i32_0, %c0_i32_1 : i32, i32, i32
  }
  func.func @transform_1(%arg0: i32) -> (i32, i32) {
    %c0_i32 = arith.constant 0 : i32
    %c0_i32_0 = arith.constant 0 : i32
    %c0_i32_1 = arith.constant 0 : i32
    return %c0_i32, %c0_i32_0 : i32, i32
  }
  func.func @transform_2(%arg0: i32) -> (i32, i32) {
    %c0_i32 = arith.constant 0 : i32
    %c0_i32_0 = arith.constant 0 : i32
    %c0_i32_1 = arith.constant 0 : i32
    return %c0_i32, %c0_i32_0 : i32, i32
  }
  func.func @transform_3(%arg0: i32) -> (i32, i32) {
    %c0_i32 = arith.constant 0 : i32
    %c0_i32_0 = arith.constant 0 : i32
    %c0_i32_1 = arith.constant 0 : i32
    return %c0_i32, %c0_i32_0 : i32, i32
  }
  func.func @transform_4(%arg0: i32) -> (i32, i32) {
    %c0_i32 = arith.constant 0 : i32
    %c0_i32_0 = arith.constant 0 : i32
    %c0_i32_1 = arith.constant 0 : i32
    return %c0_i32, %c0_i32_0 : i32, i32
  }
  func.func @transform_5(%arg0: i32) -> (i32, i32) {
    %c0_i32 = arith.constant 0 : i32
    %c0_i32_0 = arith.constant 0 : i32
    %c0_i32_1 = arith.constant 0 : i32
    return %c0_i32, %c0_i32_0 : i32, i32
  }
  func.func @transform_6(%arg0: i32) -> (i32, i32) {
    %c0_i32 = arith.constant 0 : i32
    %c0_i32_0 = arith.constant 0 : i32
    %c0_i32_1 = arith.constant 0 : i32
    return %c0_i32, %c0_i32_0 : i32, i32
  }
  func.func @transform_7(%arg0: i32) -> (i32, i32, i32) {
    %c0_i32 = arith.constant 0 : i32
    %c0_i32_0 = arith.constant 0 : i32
    %c0_i32_1 = arith.constant 0 : i32
    %c0_i32_2 = arith.constant 0 : i32
    return %c0_i32, %c0_i32_0, %c0_i32_1 : i32, i32, i32
  }
}

</mosaic_0001>

<llo_original>
// kernel: tpu_custom_call.1
$region0: #{tpu_custom_call.1}
  #allocation0 [shape = 'u32[]', space=smem, size = 0x4, offset = 0x4, fixed_abs, tag = 'smem constant byte address 0x4 - core index']
  #allocation1 [shape = 'u32[144,128]{1,0:T(1,128)}', space=vmem, size = 0x12000, scoped, tag = 'internal scratch']
  %s0 = inlined_call_operand.hbm [shape: f32[2,32,256], index: 0, kind: input, shape index: {}]
  %s1 = inlined_call_operand.vmem [shape: f32[32,2], index: 1, kind: input, shape index: {}]
  %s2 = inlined_call_operand.vmem [shape: f32[2,32], index: 2, kind: input, shape index: {}]
  %s3 = inlined_call_operand.vmem [shape: bf16[32,128], index: 3, kind: input, shape index: {}]
  %s4 = inlined_call_operand.vmem [shape: f32[1,128], index: 4, kind: input, shape index: {}]
  %s5 = inlined_call_operand.hbm [shape: bf16[128,128], index: 5, kind: input, shape index: {}]
  %s6 = inlined_call_operand.vmem [shape: f32[1,128], index: 6, kind: input, shape index: {}]
  %s7 = inlined_call_operand.hbm [shape: f32[2,16,256], index: 7, kind: output, shape index: {}]
  %s8 = sld [smem:[#allocation0]]
  $region46: #{tpu_custom_call.1} parent=0
    _
  %s10 = ssub.s32 1, %s8
  %s11 = scalar_select 0, %s10, %s8
  $region1: #{tpu_custom_call.1} parent=0
    #allocation2 [shape = 'u8[65536]{0}', space=vmem, size = 0x10000, scoped, tag = 'input window, operand 0, single buffered']
    #allocation3 [shape = 's32[1]{0}', space=sflag, size = 0x4, scoped, tag = 'scoped memory for tpu_custom_call.1']
    #allocation4 [shape = 's32[1]{0}', space=sflag, size = 0x4, scoped, tag = 'scoped memory for tpu_custom_call.1']
    #allocation5 [shape = 'u8[32768]{0}', space=vmem, size = 0x8000, scoped, tag = 'input window, operand 5, single buffered']
    #allocation6 [shape = 's32[1]{0}', space=sflag, size = 0x4, scoped, tag = 'scoped memory for tpu_custom_call.1']
    #allocation7 [shape = 'u8[32768]{0}', space=vmem, size = 0x8000, scoped, tag = 'output window, operand 0, single buffered']
    %12 = vsyncpa [#allocation3], 0
    %13 = vsyncpa [#allocation6], 0
    %14 = vsyncpa [#allocation4], 0
    // Predicated region
    $region2: #{tpu_custom_call.1} parent=1 // pred_check
      _
    $region3: #{tpu_custom_call.1} parent=1 // pred_check_branch
      %16 = sbr.rel (0) target = $region5
    $region4: #{tpu_custom_call.1} parent=1 // pred_region
      %s18 = ssub.s32 2048, 2048
      %19 = vsyncadd [#allocation3], %s18
      %s20 = sshll.u32 [#allocation2], 4
      %s21 = int_to_ptr.vmem [resolvable:$true] %s20
      %26 = dma.hbm_to_vmem [thread:$0]  %s0, 2048, %s21, [#allocation3], 256, 256, 16
    $region5: #{tpu_custom_call.1} parent=1 // pred_fallthru
      _
    // Predicated region
    $region6: #{tpu_custom_call.1} parent=1 // pred_check
      _
    $region7: #{tpu_custom_call.1} parent=1 // pred_check_branch
      %28 = sbr.rel (0) target = $region9
    $region8: #{tpu_custom_call.1} parent=1 // pred_region
      _
    $region9: #{tpu_custom_call.1} parent=1 // pred_fallthru
      _
    // Predicated region
    $region10: #{tpu_custom_call.1} parent=1 // pred_check
      _
    $region11: #{tpu_custom_call.1} parent=1 // pred_check_branch
      %30 = sbr.rel (0) target = $region13
    $region12: #{tpu_custom_call.1} parent=1 // pred_region
      _
    $region13: #{tpu_custom_call.1} parent=1 // pred_fallthru
      _
    // Predicated region
    $region14: #{tpu_custom_call.1} parent=1 // pred_check
      _
    $region15: #{tpu_custom_call.1} parent=1 // pred_check_branch
      %32 = sbr.rel (0) target = $region17
    $region16: #{tpu_custom_call.1} parent=1 // pred_region
      _
    $region17: #{tpu_custom_call.1} parent=1 // pred_fallthru
      _
    // Predicated region
    $region18: #{tpu_custom_call.1} parent=1 // pred_check
      _
    $region19: #{tpu_custom_call.1} parent=1 // pred_check_branch
      %34 = sbr.rel (0) target = $region21
    $region20: #{tpu_custom_call.1} parent=1 // pred_region
      _
    $region21: #{tpu_custom_call.1} parent=1 // pred_fallthru
      _
    // Predicated region
    $region22: #{tpu_custom_call.1} parent=1 // pred_check
      _
    $region23: #{tpu_custom_call.1} parent=1 // pred_check_branch
      %36 = sbr.rel (0) target = $region25
    $region24: #{tpu_custom_call.1} parent=1 // pred_region
      %s38 = ssub.s32 1024, 1024
      %39 = vsyncadd [#allocation6], %s38
      %s40 = sshll.u32 [#allocation5], 4
      %s41 = int_to_ptr.vmem [resolvable:$true] %s40
      %46 = dma.hbm_to_vmem [thread:$0]  %s5, 1024, %s41, [#allocation6], 64, 64, 4
    $region25: #{tpu_custom_call.1} parent=1 // pred_fallthru
      _
    // Predicated region
    $region26: #{tpu_custom_call.1} parent=1 // pred_check
      _
    $region27: #{tpu_custom_call.1} parent=1 // pred_check_branch
      %48 = sbr.rel (0) target = $region29
    $region28: #{tpu_custom_call.1} parent=1 // pred_region
      _
    $region29: #{tpu_custom_call.1} parent=1 // pred_fallthru
      _
    // Predicated region
    $region30: #{tpu_custom_call.1} parent=1 // pred_check
      _
    $region31: #{tpu_custom_call.1} parent=1 // pred_check_branch
      %50 = sbr.rel (0) target = $region33
    $region32: #{tpu_custom_call.1} parent=1 // pred_region
      %51 = dma.done [#allocation3], 2048
    $region33: #{tpu_custom_call.1} parent=1 // pred_fallthru
      _
    // Predicated region
    $region34: #{tpu_custom_call.1} parent=1 // pred_check
      _
    $region35: #{tpu_custom_call.1} parent=1 // pred_check_branch
      %53 = sbr.rel (0) target = $region37
    $region36: #{tpu_custom_call.1} parent=1 // pred_region
      %54 = dma.done [#allocation6], 1024
    $region37: #{tpu_custom_call.1} parent=1 // pred_fallthru
      _
    %v56 = vld [vmem:[#allocation2] sm:$0xff]
    %v57 = vld [vmem:[#allocation2 + $0x8] sm:$0xff]
    %v58 = vld [vmem:[#allocation2 + $0x10] sm:$0xff]
    %v59 = vld [vmem:[#allocation2 + $0x18] sm:$0xff]
    %v60 = vld [vmem:[#allocation2 + $0x20] sm:$0xff]
    %v61 = vld [vmem:[#allocation2 + $0x28] sm:$0xff]
    %v62 = vld [vmem:[#allocation2 + $0x30] sm:$0xff]
    %v63 = vld [vmem:[#allocation2 + $0x38] sm:$0xff]
    %v64 = vld [vmem:[#allocation2 + $0x40] sm:$0xff]
    %v65 = vld [vmem:[#allocation2 + $0x48] sm:$0xff]
    %v66 = vld [vmem:[#allocation2 + $0x50] sm:$0xff]
    %v67 = vld [vmem:[#allocation2 + $0x58] sm:$0xff]
    %v68 = vld [vmem:[#allocation2 + $0x60] sm:$0xff]
    %v69 = vld [vmem:[#allocation2 + $0x68] sm:$0xff]
    %v70 = vld [vmem:[#allocation2 + $0x70] sm:$0xff]
    %v71 = vld [vmem:[#allocation2 + $0x78] sm:$0xff]
    %v72 = vadd.f32 %v56, %v57
    %73 = vadd.xlane.f32.xlu0 %v72
    %v74 = vpop.xlane.xlu0 %73
    %v75 = vadd.f32 %v58, %v59
    %76 = vadd.xlane.f32.xlu0 %v75
    %v77 = vpop.xlane.xlu0 %76
    %v78 = vadd.f32 %v60, %v61
    %79 = vadd.xlane.f32.xlu0 %v78
    %v80 = vpop.xlane.xlu0 %79
    %v81 = vadd.f32 %v62, %v63
    %82 = vadd.xlane.f32.xlu0 %v81
    %v83 = vpop.xlane.xlu0 %82
    %v84 = vadd.f32 %v64, %v65
    %85 = vadd.xlane.f32.xlu0 %v84
    %v86 = vpop.xlane.xlu0 %85
    %v87 = vadd.f32 %v66, %v67
    %88 = vadd.xlane.f32.xlu0 %v87
    %v89 = vpop.xlane.xlu0 %88
    %v90 = vadd.f32 %v68, %v69
    %91 = vadd.xlane.f32.xlu0 %v90
    %v92 = vpop.xlane.xlu0 %91
    %v93 = vadd.f32 %v70, %v71
    %94 = vadd.xlane.f32.xlu0 %v93
    %v95 = vpop.xlane.xlu0 %94
    %v96 = vrcp.pop 256.0
    %v97 = vmul.f32 %v74, %v96
    %v98 = vmul.f32 %v77, %v96
    %v99 = vmul.f32 %v80, %v96
    %v100 = vmul.f32 %v83, %v96
    %v101 = vmul.f32 %v86, %v96
    %v102 = vmul.f32 %v89, %v96
    %v103 = vmul.f32 %v92, %v96
    %v104 = vmul.f32 %v95, %v96
    %v105 = vld [vmem:[%s1] sm:$0xff]
    %v106 = vld [vmem:[%s1 + $0x8] sm:$0xff]
    %v107 = vld [vmem:[%s1 + $0x10] sm:$0xff]
    %v108 = vld [vmem:[%s1 + $0x18] sm:$0xff]
    %v117 = vlaneseq
    %v118 = vand.u32 %v117, 127
    %v119 = vlaneseq
    %v120 = vshrl.u32 %v119, 7
    %v121 = vsub.s32 %v118, %v120
    %v122 = vrot.slane %v97, %v121
    %v123 = vadd.s32 %v118, 4294967288
    %v124 = vlaneseq
    %v125 = vshrl.u32 %v124, 7
    %v126 = vsub.s32 %v123, %v125
    %v127 = vrot.slane %v98, %v126
    %vm128 = vcmask 130112
    %v129 = vsel %vm128, %v127, %v122
    %v130 = vadd.s32 %v118, 4294967280
    %v131 = vlaneseq
    %v132 = vshrl.u32 %v131, 7
    %v133 = vsub.s32 %v130, %v132
    %v134 = vrot.slane %v99, %v133
    %vm135 = vcmask 195712
    %v136 = vsel %vm135, %v134, %v129
    %v137 = vadd.s32 %v118, 4294967272
    %v138 = vlaneseq
    %v139 = vshrl.u32 %v138, 7
    %v140 = vsub.s32 %v137, %v139
    %v141 = vrot.slane %v100, %v140
    %vm142 = vcmask 261312
    %v143 = vsel %vm142, %v141, %v136
    %v144 = vlaneseq
    %v145 = vshrl.u32 %v144, 7
    %v146 = vsub.s32 %v118, %v145
    %v147 = vrot.slane %v101, %v146
    %v148 = vlaneseq
    %v149 = vshrl.u32 %v148, 7
    %v150 = vsub.s32 %v123, %v149
    %v151 = vrot.slane %v102, %v150
    %v152 = vsel %vm128, %v151, %v147
    %v153 = vlaneseq
    %v154 = vshrl.u32 %v153, 7
    %v155 = vsub.s32 %v130, %v154
    %v156 = vrot.slane %v103, %v155
    %v157 = vsel %vm135, %v156, %v152
    %v158 = vlaneseq
    %v159 = vshrl.u32 %v158, 7
    %v160 = vsub.s32 %v137, %v159
    %v161 = vrot.slane %v104, %v160
    %v162 = vsel %vm142, %v161, %v157
    %vm163 = vcmask 1041409
    %v164 = vsel %vm163, %v162, %v143
    %vm165 = vcmask 261120
    %v166 = vsel %vm165, %v164, 0
    %168 = vmatprep.subr.mxu0 0.0
    %169 = vmatpush1.msra.mxu0 0.0
    %170 = vmatprep.subr.mxu0 0.0
    %171 = vmatpush1.msra.mxu0 0.0
    %172 = vmatprep.subr.mxu0 0.0
    %173 = vmatpush1.msra.mxu0 0.0
    %174 = vmatprep.subr.mxu0 0.0
    %175 = vmatpush1.msra.mxu0 0.0
    %176 = vmatprep.subr.mxu0 0.0
    %177 = vmatpush1.msra.mxu0 0.0
    %178 = vmatprep.subr.mxu0 0.0
    %179 = vmatpush1.msra.mxu0 0.0
    %180 = vmatprep.subr.mxu0 0.0
    %181 = vmatpush1.msra.mxu0 0.0
    %182 = vmatprep.subr.mxu0 0.0
    %183 = vmatpush1.msra.mxu0 0.0
    %184 = vmatprep.subr.mxu0 0.0
    %185 = vmatpush1.msra.mxu0 0.0
    %186 = vmatprep.subr.mxu0 0.0
    %187 = vmatpush1.msra.mxu0 0.0
    %188 = vmatprep.subr.mxu0 0.0
    %189 = vmatpush1.msra.mxu0 0.0
    %190 = vmatprep.subr.mxu0 0.0
    %191 = vmatpush1.msra.mxu0 0.0
    %192 = vmatprep.subr.mxu0 0.0
    %193 = vmatpush1.msra.mxu0 %v108
    %194 = vmatprep.subr.mxu0 0.0
    %195 = vmatpush1.msra.mxu0 %v107
    %196 = vmatprep.subr.mxu0 0.0
    %197 = vmatpush1.msra.mxu0 %v106
    %198 = vmatprep.subr.mxu0 0.0
    %199 = vmatpush1.msra.mxu0 %v105
    %200 = vmatprep.subr.mxu0 0.0
    %201 = vmatpush2.msra.mxu0 0.0
    %202 = vmatprep.subr.mxu0 0.0
    %203 = vmatpush2.msra.mxu0 0.0
    %204 = vmatprep.subr.mxu0 0.0
    %205 = vmatpush2.msra.mxu0 0.0
    %206 = vmatprep.subr.mxu0 0.0
    %207 = vmatpush2.msra.mxu0 0.0
    %208 = vmatprep.subr.mxu0 0.0
    %209 = vmatpush2.msra.mxu0 0.0
    %210 = vmatprep.subr.mxu0 0.0
    %211 = vmatpush2.msra.mxu0 0.0
    %212 = vmatprep.subr.mxu0 0.0
    %213 = vmatpush2.msra.mxu0 0.0
    %214 = vmatprep.subr.mxu0 0.0
    %215 = vmatpush2.msra.mxu0 0.0
    %216 = vmatprep.subr.mxu0 0.0
    %217 = vmatpush2.msra.mxu0 0.0
    %218 = vmatprep.subr.mxu0 0.0
    %219 = vmatpush2.msra.mxu0 0.0
    %220 = vmatprep.subr.mxu0 0.0
    %221 = vmatpush2.msra.mxu0 0.0
    %222 = vmatprep.subr.mxu0 0.0
    %223 = vmatpush2.msra.mxu0 0.0
    %224 = vmatprep.subr.mxu0 0.0
    %225 = vmatpush2.msra.mxu0 0.0
    %226 = vmatprep.subr.mxu0 0.0
    %227 = vmatpush2.msra.mxu0 0.0
    %228 = vmatprep.subr.mxu0 0.0
    %229 = vmatpush2.msra.mxu0 0.0
    %230 = vmatprep.subr.mxu0 0.0
    %231 = vmatpush2.msra.mxu0 0.0
    %232 = vmatprep.mubr.f32.mxu0 0.0
    %233 = vmatmul.mubr.f32.gmra.mxu0 %v166
    %v234 = vpop.f32.mrf.mxu0
    %v235 = vadd.f32 0.0, %v234
    %v236 = vpop.f32.mrf.mxu0
    %237 = vdwg.mxu0
    %v238 = vmax.f32 %v235, 0.0
    %v239 = vld [vmem:[%s2] sm:$0x3]
    %vm240 = vcmask 15360
    %v242 = vsel %vm240, %v238, 0
    %vm244 = vcmask 1041408
    %v246 = vsel %vm244, %v239, 0
    %248 = vmatprep.subr.mxu0 0.0
    %249 = vmatpush1.msra.mxu0 0.0
    %250 = vmatprep.subr.mxu0 0.0
    %251 = vmatpush1.msra.mxu0 0.0
    %252 = vmatprep.subr.mxu0 0.0
    %253 = vmatpush1.msra.mxu0 0.0
    %254 = vmatprep.subr.mxu0 0.0
    %255 = vmatpush1.msra.mxu0 0.0
    %256 = vmatprep.subr.mxu0 0.0
    %257 = vmatpush1.msra.mxu0 0.0
    %258 = vmatprep.subr.mxu0 0.0
    %259 = vmatpush1.msra.mxu0 0.0
    %260 = vmatprep.subr.mxu0 0.0
    %261 = vmatpush1.msra.mxu0 0.0
    %262 = vmatprep.subr.mxu0 0.0
    %263 = vmatpush1.msra.mxu0 0.0
    %264 = vmatprep.subr.mxu0 0.0
    %265 = vmatpush1.msra.mxu0 0.0
    %266 = vmatprep.subr.mxu0 0.0
    %267 = vmatpush1.msra.mxu0 0.0
    %268 = vmatprep.subr.mxu0 0.0
    %269 = vmatpush1.msra.mxu0 0.0
    %270 = vmatprep.subr.mxu0 0.0
    %271 = vmatpush1.msra.mxu0 0.0
    %272 = vmatprep.subr.mxu0 0.0
    %273 = vmatpush1.msra.mxu0 0.0
    %274 = vmatprep.subr.mxu0 0.0
    %275 = vmatpush1.msra.mxu0 0.0
    %276 = vmatprep.subr.mxu0 0.0
    %277 = vmatpush1.msra.mxu0 0.0
    %278 = vmatprep.subr.mxu0 0.0
    %279 = vmatpush1.msra.mxu0 %v246
    %280 = vmatprep.subr.mxu0 0.0
    %281 = vmatpush2.msra.mxu0 0.0
    %282 = vmatprep.subr.mxu0 0.0
    %283 = vmatpush2.msra.mxu0 0.0
    %284 = vmatprep.subr.mxu0 0.0
    %285 = vmatpush2.msra.mxu0 0.0
    %286 = vmatprep.subr.mxu0 0.0
    %287 = vmatpush2.msra.mxu0 0.0
    %288 = vmatprep.subr.mxu0 0.0
    %289 = vmatpush2.msra.mxu0 0.0
    %290 = vmatprep.subr.mxu0 0.0
    %291 = vmatpush2.msra.mxu0 0.0
    %292 = vmatprep.subr.mxu0 0.0
    %293 = vmatpush2.msra.mxu0 0.0
    %294 = vmatprep.subr.mxu0 0.0
    %295 = vmatpush2.msra.mxu0 0.0
    %296 = vmatprep.subr.mxu0 0.0
    %297 = vmatpush2.msra.mxu0 0.0
    %298 = vmatprep.subr.mxu0 0.0
    %299 = vmatpush2.msra.mxu0 0.0
    %300 = vmatprep.subr.mxu0 0.0
    %301 = vmatpush2.msra.mxu0 0.0
    %302 = vmatprep.subr.mxu0 0.0
    %303 = vmatpush2.msra.mxu0 0.0
    %304 = vmatprep.subr.mxu0 0.0
    %305 = vmatpush2.msra.mxu0 0.0
    %306 = vmatprep.subr.mxu0 0.0
    %307 = vmatpush2.msra.mxu0 0.0
    %308 = vmatprep.subr.mxu0 0.0
    %309 = vmatpush2.msra.mxu0 0.0
    %310 = vmatprep.subr.mxu0 0.0
    %311 = vmatpush2.msra.mxu0 0.0
    %312 = vmatprep.mubr.f32.mxu0 0.0
    %313 = vmatmul.mubr.f32.gmra.mxu0 %v242
    %v314 = vpop.f32.mrf.mxu0
    %v315 = vadd.f32 0.0, %v314
    %v316 = vpop.f32.mrf.mxu0
    %317 = vdwg.mxu0
    %v318 = vxor.u32 %v315, 2147483648
    %v319 = vmul.f32 %v318, 1.442695
    %v320 = vpow.pop %v319
    %v321 = vadd.f32 %v320, 1.0
    %v322 = vrcp.pop %v321
    %v323 = vmul.f32 1.0, %v322
    %324 = vxpose.xlu0.b32.start [1/16] %v56, 128
    %325 = vxpose.xlu0.b32.cont [2/16] %v58, 128
    %326 = vxpose.xlu0.b32.cont [3/16] %v60, 128
    %327 = vxpose.xlu0.b32.cont [4/16] %v62, 128
    %328 = vxpose.xlu0.b32.cont [5/16] 0.0, 128
    %329 = vxpose.xlu0.b32.cont [6/16] 0.0, 128
    %330 = vxpose.xlu0.b32.cont [7/16] 0.0, 128
    %331 = vxpose.xlu0.b32.cont [8/16] 0.0, 128
    %332 = vxpose.xlu0.b32.cont [9/16] 0.0, 128
    %333 = vxpose.xlu0.b32.cont [10/16] 0.0, 128
    %334 = vxpose.xlu0.b32.cont [11/16] 0.0, 128
    %335 = vxpose.xlu0.b32.cont [12/16] 0.0, 128
    %336 = vxpose.xlu0.b32.cont [13/16] 0.0, 128
    %337 = vxpose.xlu0.b32.cont [14/16] 0.0, 128
    %338 = vxpose.xlu0.b32.cont [15/16] 0.0, 128
    %339 = vxpose.xlu0.b32.end [16/16] 0.0, 128
    %v340 = vpop.trf.xlu0
    %v341 = vpop.trf.xlu0
    %v342 = vpop.trf.xlu0
    %v343 = vpop.trf.xlu0
    %v344 = vpop.trf.xlu0
    %v345 = vpop.trf.xlu0
    %v346 = vpop.trf.xlu0
    %v347 = vpop.trf.xlu0
    %v348 = vpop.trf.xlu0
    %v349 = vpop.trf.xlu0
    %v350 = vpop.trf.xlu0
    %v351 = vpop.trf.xlu0
    %v352 = vpop.trf.xlu0
    %v353 = vpop.trf.xlu0
    %v354 = vpop.trf.xlu0
    %v355 = vpop.trf.xlu0
    %356 = vxpose.xlu0.b32.start [1/16] %v57, 128
    %357 = vxpose.xlu0.b32.cont [2/16] %v59, 128
    %358 = vxpose.xlu0.b32.cont [3/16] %v61, 128
    %359 = vxpose.xlu0.b32.cont [4/16] %v63, 128
    %360 = vxpose.xlu0.b32.cont [5/16] 0.0, 128
    %361 = vxpose.xlu0.b32.cont [6/16] 0.0, 128
    %362 = vxpose.xlu0.b32.cont [7/16] 0.0, 128
    %363 = vxpose.xlu0.b32.cont [8/16] 0.0, 128
    %364 = vxpose.xlu0.b32.cont [9/16] 0.0, 128
    %365 = vxpose.xlu0.b32.cont [10/16] 0.0, 128
    %366 = vxpose.xlu0.b32.cont [11/16] 0.0, 128
    %367 = vxpose.xlu0.b32.cont [12/16] 0.0, 128
    %368 = vxpose.xlu0.b32.cont [13/16] 0.0, 128
    %369 = vxpose.xlu0.b32.cont [14/16] 0.0, 128
    %370 = vxpose.xlu0.b32.cont [15/16] 0.0, 128
    %371 = vxpose.xlu0.b32.end [16/16] 0.0, 128
    %v372 = vpop.trf.xlu0
    %v373 = vpop.trf.xlu0
    %v374 = vpop.trf.xlu0
    %v375 = vpop.trf.xlu0
    %v376 = vpop.trf.xlu0
    %v377 = vpop.trf.xlu0
    %v378 = vpop.trf.xlu0
    %v379 = vpop.trf.xlu0
    %v380 = vpop.trf.xlu0
    %v381 = vpop.trf.xlu0
    %v382 = vpop.trf.xlu0
    %v383 = vpop.trf.xlu0
    %v384 = vpop.trf.xlu0
    %v385 = vpop.trf.xlu0
    %v386 = vpop.trf.xlu0
    %v387 = vpop.trf.xlu0
    %v388 = vlaneseq
    %v389 = vshrl.u32 %v388, 7
    %v390 = vsub.s32 0, %v389
    %v391 = vrot.slane %v323, %v390
    %v392 = vmul.f32 %v340, %v391
    %v393 = vmul.f32 %v341, %v391
    %v394 = vmul.f32 %v342, %v391
    %v395 = vmul.f32 %v343, %v391
    %v396 = vmul.f32 %v344, %v391
    %v397 = vmul.f32 %v345, %v391
    %v398 = vmul.f32 %v346, %v391
    %v399 = vmul.f32 %v347, %v391
    %v400 = vmul.f32 %v348, %v391
    %v401 = vmul.f32 %v349, %v391
    %v402 = vmul.f32 %v350, %v391
    %v403 = vmul.f32 %v351, %v391
    %v404 = vmul.f32 %v352, %v391
    %v405 = vmul.f32 %v353, %v391
    %v406 = vmul.f32 %v354, %v391
    %v407 = vmul.f32 %v355, %v391
    %v408 = vmul.f32 %v372, %v391
    %v409 = vmul.f32 %v373, %v391
    %v410 = vmul.f32 %v374, %v391
    %v411 = vmul.f32 %v375, %v391
    %v412 = vmul.f32 %v376, %v391
    %v413 = vmul.f32 %v377, %v391
    %v414 = vmul.f32 %v378, %v391
    %v415 = vmul.f32 %v379, %v391
    %v416 = vmul.f32 %v380, %v391
    %v417 = vmul.f32 %v381, %v391
    %v418 = vmul.f32 %v382, %v391
    %v419 = vmul.f32 %v383, %v391
    %v420 = vmul.f32 %v384, %v391
    %v421 = vmul.f32 %v385, %v391
    %v422 = vmul.f32 %v386, %v391
    %v423 = vmul.f32 %v387, %v391
    %424 = vxpose.xlu0.b32.start [1/16] %v64, 128
    %425 = vxpose.xlu0.b32.cont [2/16] %v66, 128
    %426 = vxpose.xlu0.b32.cont [3/16] %v68, 128
    %427 = vxpose.xlu0.b32.cont [4/16] %v70, 128
    %428 = vxpose.xlu0.b32.cont [5/16] 0.0, 128
    %429 = vxpose.xlu0.b32.cont [6/16] 0.0, 128
    %430 = vxpose.xlu0.b32.cont [7/16] 0.0, 128
    %431 = vxpose.xlu0.b32.cont [8/16] 0.0, 128
    %432 = vxpose.xlu0.b32.cont [9/16] 0.0, 128
    %433 = vxpose.xlu0.b32.cont [10/16] 0.0, 128
    %434 = vxpose.xlu0.b32.cont [11/16] 0.0, 128
    %435 = vxpose.xlu0.b32.cont [12/16] 0.0, 128
    %436 = vxpose.xlu0.b32.cont [13/16] 0.0, 128
    %437 = vxpose.xlu0.b32.cont [14/16] 0.0, 128
    %438 = vxpose.xlu0.b32.cont [15/16] 0.0, 128
    %439 = vxpose.xlu0.b32.end [16/16] 0.0, 128
    %v440 = vpop.trf.xlu0
    %v441 = vpop.trf.xlu0
    %v442 = vpop.trf.xlu0
    %v443 = vpop.trf.xlu0
    %v444 = vpop.trf.xlu0
    %v445 = vpop.trf.xlu0
    %v446 = vpop.trf.xlu0
    %v447 = vpop.trf.xlu0
    %v448 = vpop.trf.xlu0
    %v449 = vpop.trf.xlu0
    %v450 = vpop.trf.xlu0
    %v451 = vpop.trf.xlu0
    %v452 = vpop.trf.xlu0
    %v453 = vpop.trf.xlu0
    %v454 = vpop.trf.xlu0
    %v455 = vpop.trf.xlu0
    %456 = vxpose.xlu0.b32.start [1/16] %v65, 128
    %457 = vxpose.xlu0.b32.cont [2/16] %v67, 128
    %458 = vxpose.xlu0.b32.cont [3/16] %v69, 128
    %459 = vxpose.xlu0.b32.cont [4/16] %v71, 128
    %460 = vxpose.xlu0.b32.cont [5/16] 0.0, 128
    %461 = vxpose.xlu0.b32.cont [6/16] 0.0, 128
    %462 = vxpose.xlu0.b32.cont [7/16] 0.0, 128
    %463 = vxpose.xlu0.b32.cont [8/16] 0.0, 128
    %464 = vxpose.xlu0.b32.cont [9/16] 0.0, 128
    %465 = vxpose.xlu0.b32.cont [10/16] 0.0, 128
    %466 = vxpose.xlu0.b32.cont [11/16] 0.0, 128
    %467 = vxpose.xlu0.b32.cont [12/16] 0.0, 128
    %468 = vxpose.xlu0.b32.cont [13/16] 0.0, 128
    %469 = vxpose.xlu0.b32.cont [14/16] 0.0, 128
    %470 = vxpose.xlu0.b32.cont [15/16] 0.0, 128
    %471 = vxpose.xlu0.b32.end [16/16] 0.0, 128
    %v472 = vpop.trf.xlu0
    %v473 = vpop.trf.xlu0
    %v474 = vpop.trf.xlu0
    %v475 = vpop.trf.xlu0
    %v476 = vpop.trf.xlu0
    %v477 = vpop.trf.xlu0
    %v478 = vpop.trf.xlu0
    %v479 = vpop.trf.xlu0
    %v480 = vpop.trf.xlu0
    %v481 = vpop.trf.xlu0
    %v482 = vpop.trf.xlu0
    %v483 = vpop.trf.xlu0
    %v484 = vpop.trf.xlu0
    %v485 = vpop.trf.xlu0
    %v486 = vpop.trf.xlu0
    %v487 = vpop.trf.xlu0
    %v488 = vlaneseq
    %v489 = vshrl.u32 %v488, 7
    %v490 = vsub.s32 1, %v489
    %v491 = vrot.slane %v323, %v490
    %v492 = vmul.f32 %v440, %v491
    %v493 = vmul.f32 %v441, %v491
    %v494 = vmul.f32 %v442, %v491
    %v495 = vmul.f32 %v443, %v491
    %v496 = vmul.f32 %v444, %v491
    %v497 = vmul.f32 %v445, %v491
    %v498 = vmul.f32 %v446, %v491
    %v499 = vmul.f32 %v447, %v491
    %v500 = vmul.f32 %v448, %v491
    %v501 = vmul.f32 %v449, %v491
    %v502 = vmul.f32 %v450, %v491
    %v503 = vmul.f32 %v451, %v491
    %v504 = vmul.f32 %v452, %v491
    %v505 = vmul.f32 %v453, %v491
    %v506 = vmul.f32 %v454, %v491
    %v507 = vmul.f32 %v455, %v491
    %v508 = vmul.f32 %v472, %v491
    %v509 = vmul.f32 %v473, %v491
    %v510 = vmul.f32 %v474, %v491
    %v511 = vmul.f32 %v475, %v491
    %v512 = vmul.f32 %v476, %v491
    %v513 = vmul.f32 %v477, %v491
    %v514 = vmul.f32 %v478, %v491
    %v515 = vmul.f32 %v479, %v491
    %v516 = vmul.f32 %v480, %v491
    %v517 = vmul.f32 %v481, %v491
    %v518 = vmul.f32 %v482, %v491
    %v519 = vmul.f32 %v483, %v491
    %v520 = vmul.f32 %v484, %v491
    %v521 = vmul.f32 %v485, %v491
    %v522 = vmul.f32 %v486, %v491
    %v523 = vmul.f32 %v487, %v491
    %v524 = vpack.c.bf16 %v393, %v392
    %v525 = vpack.c.bf16 %v395, %v394
    %v526 = vpack.c.bf16 %v397, %v396
    %v527 = vpack.c.bf16 %v399, %v398
    %v528 = vpack.c.bf16 %v401, %v400
    %v529 = vpack.c.bf16 %v403, %v402
    %v530 = vpack.c.bf16 %v405, %v404
    %v531 = vpack.c.bf16 %v407, %v406
    %v532 = vpack.c.bf16 %v409, %v408
    %v533 = vpack.c.bf16 %v411, %v410
    %v534 = vpack.c.bf16 %v413, %v412
    %v535 = vpack.c.bf16 %v415, %v414
    %v536 = vpack.c.bf16 %v417, %v416
    %v537 = vpack.c.bf16 %v419, %v418
    %v538 = vpack.c.bf16 %v421, %v420
    %v539 = vpack.c.bf16 %v423, %v422
    %v540 = vpack.c.bf16 %v493, %v492
    %v541 = vpack.c.bf16 %v495, %v494
    %v542 = vpack.c.bf16 %v497, %v496
    %v543 = vpack.c.bf16 %v499, %v498
    %v544 = vpack.c.bf16 %v501, %v500
    %v545 = vpack.c.bf16 %v503, %v502
    %v546 = vpack.c.bf16 %v505, %v504
    %v547 = vpack.c.bf16 %v507, %v506
    %v548 = vpack.c.bf16 %v509, %v508
    %v549 = vpack.c.bf16 %v511, %v510
    %v550 = vpack.c.bf16 %v513, %v512
    %v551 = vpack.c.bf16 %v515, %v514
    %v552 = vpack.c.bf16 %v517, %v516
    %v553 = vpack.c.bf16 %v519, %v518
    %v554 = vpack.c.bf16 %v521, %v520
    %v555 = vpack.c.bf16 %v523, %v522
    %v556 = vld [vmem:[%s3] sm:$0xf]
    %v557 = vld [vmem:[%s3 + $0x4] sm:$0xf]
    %v558 = vld [vmem:[%s3 + $0x8] sm:$0xf]
    %v559 = vld [vmem:[%s3 + $0xc] sm:$0xf]
    %v560 = vld [vmem:[%s4] sm:$0x1]
    %v562 = vlaneseq
    %v563 = vshrl.u32 %v562, 7
    %v564 = vsub.s32 0, %v563
    %v565 = vrot.slane %v560, %v564
    %v571 = vunpack.c.l.b16 %v556
    %v572 = vunpack.c.l.b16 %v557
    %v573 = vunpack.c.l.b16 %v558
    %v574 = vunpack.c.l.b16 %v559
    %v575 = vpack.c.b16 %v572, %v571
    %v576 = vpack.c.b16 %v574, %v573
    %v580 = vsel %vm165, %v524, 0
    %v583 = vsel %vm165, %v525, 0
    %v586 = vsel %vm165, %v526, 0
    %v589 = vsel %vm165, %v527, 0
    %v592 = vsel %vm165, %v528, 0
    %v595 = vsel %vm165, %v529, 0
    %v598 = vsel %vm165, %v530, 0
    %v601 = vsel %vm165, %v531, 0
    %v604 = vsel %vm165, %v532, 0
    %v607 = vsel %vm165, %v533, 0
    %v610 = vsel %vm165, %v534, 0
    %v613 = vsel %vm165, %v535, 0
    %v616 = vsel %vm165, %v536, 0
    %v619 = vsel %vm165, %v537, 0
    %v622 = vsel %vm165, %v538, 0
    %v625 = vsel %vm165, %v539, 0
    %v628 = vsel %vm165, %v540, 0
    %v631 = vsel %vm165, %v541, 0
    %v634 = vsel %vm165, %v542, 0
    %v637 = vsel %vm165, %v543, 0
    %v640 = vsel %vm165, %v544, 0
    %v643 = vsel %vm165, %v545, 0
    %v646 = vsel %vm165, %v546, 0
    %v649 = vsel %vm165, %v547, 0
    %v652 = vsel %vm165, %v548, 0
    %v655 = vsel %vm165, %v549, 0
    %v658 = vsel %vm165, %v550, 0
    %v661 = vsel %vm165, %v551, 0
    %v664 = vsel %vm165, %v552, 0
    %v667 = vsel %vm165, %v553, 0
    %v670 = vsel %vm165, %v554, 0
    %v673 = vsel %vm165, %v555, 0
    %675 = vmatprep.subr.bf16.mxu0 0
    %676 = vmatpush1.bf16.msra.mxu0 0
    %677 = vmatprep.subr.bf16.mxu0 0
    %678 = vmatpush1.bf16.msra.mxu0 0
    %679 = vmatprep.subr.bf16.mxu0 0
    %680 = vmatpush1.bf16.msra.mxu0 0
    %681 = vmatprep.subr.bf16.mxu0 0
    %682 = vmatpush1.bf16.msra.mxu0 0
    %683 = vmatprep.subr.bf16.mxu0 0
    %684 = vmatpush1.bf16.msra.mxu0 0
    %685 = vmatprep.subr.bf16.mxu0 0
    %686 = vmatpush1.bf16.msra.mxu0 0
    %687 = vmatprep.subr.bf16.mxu0 0
    %688 = vmatpush1.bf16.msra.mxu0 %v576
    %689 = vmatprep.subr.bf16.mxu0 0
    %690 = vmatpush1.bf16.msra.mxu0 %v575
    %691 = vmatprep.subr.bf16.mxu0 0
    %692 = vmatpush2.bf16.msra.mxu0 0
    %693 = vmatprep.subr.bf16.mxu0 0
    %694 = vmatpush2.bf16.msra.mxu0 0
    %695 = vmatprep.subr.bf16.mxu0 0
    %696 = vmatpush2.bf16.msra.mxu0 0
    %697 = vmatprep.subr.bf16.mxu0 0
    %698 = vmatpush2.bf16.msra.mxu0 0
    %699 = vmatprep.subr.bf16.mxu0 0
    %700 = vmatpush2.bf16.msra.mxu0 0
    %701 = vmatprep.subr.bf16.mxu0 0
    %702 = vmatpush2.bf16.msra.mxu0 0
    %703 = vmatprep.subr.bf16.mxu0 0
    %704 = vmatpush2.bf16.msra.mxu0 0
    %705 = vmatprep.subr.bf16.mxu0 0
    %706 = vmatpush2.bf16.msra.mxu0 0
    %707 = vmatprep.mubr.bf16.mxu0 0
    %708 = vmatmul.mubr.bf16.gmra.mxu0 %v580
    %v709 = vpop.f32.mrf.mxu0
    %v710 = vadd.f32 %v565, %v709
    %v711 = vpop.f32.mrf.mxu0
    %v712 = vpop.f32.mrf.mxu0
    %v713 = vadd.f32 %v565, %v712
    %v714 = vpop.f32.mrf.mxu0
    %715 = vmatprep.mubr.bf16.mxu0 0
    %716 = vmatmul.mubr.bf16.gmra.mxu0 %v583
    %v717 = vpop.f32.mrf.mxu0
    %v718 = vadd.f32 %v565, %v717
    %v719 = vpop.f32.mrf.mxu0
    %v720 = vpop.f32.mrf.mxu0
    %v721 = vadd.f32 %v565, %v720
    %v722 = vpop.f32.mrf.mxu0
    %723 = vmatprep.mubr.bf16.mxu0 0
    %724 = vmatmul.mubr.bf16.gmra.mxu0 %v586
    %v725 = vpop.f32.mrf.mxu0
    %v726 = vadd.f32 %v565, %v725
    %v727 = vpop.f32.mrf.mxu0
    %v728 = vpop.f32.mrf.mxu0
    %v729 = vadd.f32 %v565, %v728
    %v730 = vpop.f32.mrf.mxu0
    %731 = vmatprep.mubr.bf16.mxu0 0
    %732 = vmatmul.mubr.bf16.gmra.mxu0 %v589
    %v733 = vpop.f32.mrf.mxu0
    %v734 = vadd.f32 %v565, %v733
    %v735 = vpop.f32.mrf.mxu0
    %v736 = vpop.f32.mrf.mxu0
    %v737 = vadd.f32 %v565, %v736
    %v738 = vpop.f32.mrf.mxu0
    %739 = vmatprep.mubr.bf16.mxu0 0
    %740 = vmatmul.mubr.bf16.gmra.mxu0 %v592
    %v741 = vpop.f32.mrf.mxu0
    %v742 = vadd.f32 %v565, %v741
    %v743 = vpop.f32.mrf.mxu0
    %v744 = vpop.f32.mrf.mxu0
    %v745 = vadd.f32 %v565, %v744
    %v746 = vpop.f32.mrf.mxu0
    %747 = vmatprep.mubr.bf16.mxu0 0
    %748 = vmatmul.mubr.bf16.gmra.mxu0 %v595
    %v749 = vpop.f32.mrf.mxu0
    %v750 = vadd.f32 %v565, %v749
    %v751 = vpop.f32.mrf.mxu0
    %v752 = vpop.f32.mrf.mxu0
    %v753 = vadd.f32 %v565, %v752
    %v754 = vpop.f32.mrf.mxu0
    %755 = vmatprep.mubr.bf16.mxu0 0
    %756 = vmatmul.mubr.bf16.gmra.mxu0 %v598
    %v757 = vpop.f32.mrf.mxu0
    %v758 = vadd.f32 %v565, %v757
    %v759 = vpop.f32.mrf.mxu0
    %v760 = vpop.f32.mrf.mxu0
    %v761 = vadd.f32 %v565, %v760
    %v762 = vpop.f32.mrf.mxu0
    %763 = vmatprep.mubr.bf16.mxu0 0
    %764 = vmatmul.mubr.bf16.gmra.mxu0 %v601
    %v765 = vpop.f32.mrf.mxu0
    %v766 = vadd.f32 %v565, %v765
    %v767 = vpop.f32.mrf.mxu0
    %v768 = vpop.f32.mrf.mxu0
    %v769 = vadd.f32 %v565, %v768
    %v770 = vpop.f32.mrf.mxu0
    %771 = vmatprep.mubr.bf16.mxu0 0
    %772 = vmatmul.mubr.bf16.gmra.mxu0 %v604
    %v773 = vpop.f32.mrf.mxu0
    %v774 = vadd.f32 %v565, %v773
    %v775 = vpop.f32.mrf.mxu0
    %v776 = vpop.f32.mrf.mxu0
    %v777 = vadd.f32 %v565, %v776
    %v778 = vpop.f32.mrf.mxu0
    %779 = vmatprep.mubr.bf16.mxu0 0
    %780 = vmatmul.mubr.bf16.gmra.mxu0 %v607
    %v781 = vpop.f32.mrf.mxu0
    %v782 = vadd.f32 %v565, %v781
    %v783 = vpop.f32.mrf.mxu0
    %v784 = vpop.f32.mrf.mxu0
    %v785 = vadd.f32 %v565, %v784
    %v786 = vpop.f32.mrf.mxu0
    %787 = vmatprep.mubr.bf16.mxu0 0
    %788 = vmatmul.mubr.bf16.gmra.mxu0 %v610
    %v789 = vpop.f32.mrf.mxu0
    %v790 = vadd.f32 %v565, %v789
    %v791 = vpop.f32.mrf.mxu0
    %v792 = vpop.f32.mrf.mxu0
    %v793 = vadd.f32 %v565, %v792
    %v794 = vpop.f32.mrf.mxu0
    %795 = vmatprep.mubr.bf16.mxu0 0
    %796 = vmatmul.mubr.bf16.gmra.mxu0 %v613
    %v797 = vpop.f32.mrf.mxu0
    %v798 = vadd.f32 %v565, %v797
    %v799 = vpop.f32.mrf.mxu0
    %v800 = vpop.f32.mrf.mxu0
    %v801 = vadd.f32 %v565, %v800
    %v802 = vpop.f32.mrf.mxu0
    %803 = vmatprep.mubr.bf16.mxu0 0
    %804 = vmatmul.mubr.bf16.gmra.mxu0 %v616
    %v805 = vpop.f32.mrf.mxu0
    %v806 = vadd.f32 %v565, %v805
    %v807 = vpop.f32.mrf.mxu0
    %v808 = vpop.f32.mrf.mxu0
    %v809 = vadd.f32 %v565, %v808
    %v810 = vpop.f32.mrf.mxu0
    %811 = vmatprep.mubr.bf16.mxu0 0
    %812 = vmatmul.mubr.bf16.gmra.mxu0 %v619
    %v813 = vpop.f32.mrf.mxu0
    %v814 = vadd.f32 %v565, %v813
    %v815 = vpop.f32.mrf.mxu0
    %v816 = vpop.f32.mrf.mxu0
    %v817 = vadd.f32 %v565, %v816
    %v818 = vpop.f32.mrf.mxu0
    %819 = vmatprep.mubr.bf16.mxu0 0
    %820 = vmatmul.mubr.bf16.gmra.mxu0 %v622
    %v821 = vpop.f32.mrf.mxu0
    %v822 = vadd.f32 %v565, %v821
    %v823 = vpop.f32.mrf.mxu0
    %v824 = vpop.f32.mrf.mxu0
    %v825 = vadd.f32 %v565, %v824
    %v826 = vpop.f32.mrf.mxu0
    %827 = vmatprep.mubr.bf16.mxu0 0
    %828 = vmatmul.mubr.bf16.gmra.mxu0 %v625
    %v829 = vpop.f32.mrf.mxu0
    %v830 = vadd.f32 %v565, %v829
    %v831 = vpop.f32.mrf.mxu0
    %v832 = vpop.f32.mrf.mxu0
    %v833 = vadd.f32 %v565, %v832
    %v834 = vpop.f32.mrf.mxu0
    %835 = vmatprep.mubr.bf16.mxu0 0
    %836 = vmatmul.mubr.bf16.gmra.mxu0 %v628
    %v837 = vpop.f32.mrf.mxu0
    %v838 = vadd.f32 %v565, %v837
    %v839 = vpop.f32.mrf.mxu0
    %v840 = vpop.f32.mrf.mxu0
    %v841 = vadd.f32 %v565, %v840
    %v842 = vpop.f32.mrf.mxu0
    %843 = vmatprep.mubr.bf16.mxu0 0
    %844 = vmatmul.mubr.bf16.gmra.mxu0 %v631
    %v845 = vpop.f32.mrf.mxu0
    %v846 = vadd.f32 %v565, %v845
    %v847 = vpop.f32.mrf.mxu0
    %v848 = vpop.f32.mrf.mxu0
    %v849 = vadd.f32 %v565, %v848
    %v850 = vpop.f32.mrf.mxu0
    %851 = vmatprep.mubr.bf16.mxu0 0
    %852 = vmatmul.mubr.bf16.gmra.mxu0 %v634
    %v853 = vpop.f32.mrf.mxu0
    %v854 = vadd.f32 %v565, %v853
    %v855 = vpop.f32.mrf.mxu0
    %v856 = vpop.f32.mrf.mxu0
    %v857 = vadd.f32 %v565, %v856
    %v858 = vpop.f32.mrf.mxu0
    %859 = vmatprep.mubr.bf16.mxu0 0
    %860 = vmatmul.mubr.bf16.gmra.mxu0 %v637
    %v861 = vpop.f32.mrf.mxu0
    %v862 = vadd.f32 %v565, %v861
    %v863 = vpop.f32.mrf.mxu0
    %v864 = vpop.f32.mrf.mxu0
    %v865 = vadd.f32 %v565, %v864
    %v866 = vpop.f32.mrf.mxu0
    %867 = vmatprep.mubr.bf16.mxu0 0
    %868 = vmatmul.mubr.bf16.gmra.mxu0 %v640
    %v869 = vpop.f32.mrf.mxu0
    %v870 = vadd.f32 %v565, %v869
    %v871 = vpop.f32.mrf.mxu0
    %v872 = vpop.f32.mrf.mxu0
    %v873 = vadd.f32 %v565, %v872
    %v874 = vpop.f32.mrf.mxu0
    %875 = vmatprep.mubr.bf16.mxu0 0
    %876 = vmatmul.mubr.bf16.gmra.mxu0 %v643
    %v877 = vpop.f32.mrf.mxu0
    %v878 = vadd.f32 %v565, %v877
    %v879 = vpop.f32.mrf.mxu0
    %v880 = vpop.f32.mrf.mxu0
    %v881 = vadd.f32 %v565, %v880
    %v882 = vpop.f32.mrf.mxu0
    %883 = vmatprep.mubr.bf16.mxu0 0
    %884 = vmatmul.mubr.bf16.gmra.mxu0 %v646
    %v885 = vpop.f32.mrf.mxu0
    %v886 = vadd.f32 %v565, %v885
    %v887 = vpop.f32.mrf.mxu0
    %v888 = vpop.f32.mrf.mxu0
    %v889 = vadd.f32 %v565, %v888
    %v890 = vpop.f32.mrf.mxu0
    %891 = vmatprep.mubr.bf16.mxu0 0
    %892 = vmatmul.mubr.bf16.gmra.mxu0 %v649
    %v893 = vpop.f32.mrf.mxu0
    %v894 = vadd.f32 %v565, %v893
    %v895 = vpop.f32.mrf.mxu0
    %v896 = vpop.f32.mrf.mxu0
    %v897 = vadd.f32 %v565, %v896
    %v898 = vpop.f32.mrf.mxu0
    %899 = vmatprep.mubr.bf16.mxu0 0
    %900 = vmatmul.mubr.bf16.gmra.mxu0 %v652
    %v901 = vpop.f32.mrf.mxu0
    %v902 = vadd.f32 %v565, %v901
    %v903 = vpop.f32.mrf.mxu0
    %v904 = vpop.f32.mrf.mxu0
    %v905 = vadd.f32 %v565, %v904
    %v906 = vpop.f32.mrf.mxu0
    %907 = vmatprep.mubr.bf16.mxu0 0
    %908 = vmatmul.mubr.bf16.gmra.mxu0 %v655
    %v909 = vpop.f32.mrf.mxu0
    %v910 = vadd.f32 %v565, %v909
    %v911 = vpop.f32.mrf.mxu0
    %v912 = vpop.f32.mrf.mxu0
    %v913 = vadd.f32 %v565, %v912
    %v914 = vpop.f32.mrf.mxu0
    %915 = vmatprep.mubr.bf16.mxu0 0
    %916 = vmatmul.mubr.bf16.gmra.mxu0 %v658
    %v917 = vpop.f32.mrf.mxu0
    %v918 = vadd.f32 %v565, %v917
    %v919 = vpop.f32.mrf.mxu0
    %v920 = vpop.f32.mrf.mxu0
    %v921 = vadd.f32 %v565, %v920
    %v922 = vpop.f32.mrf.mxu0
    %923 = vmatprep.mubr.bf16.mxu0 0
    %924 = vmatmul.mubr.bf16.gmra.mxu0 %v661
    %v925 = vpop.f32.mrf.mxu0
    %v926 = vadd.f32 %v565, %v925
    %v927 = vpop.f32.mrf.mxu0
    %v928 = vpop.f32.mrf.mxu0
    %v929 = vadd.f32 %v565, %v928
    %v930 = vpop.f32.mrf.mxu0
    %931 = vmatprep.mubr.bf16.mxu0 0
    %932 = vmatmul.mubr.bf16.gmra.mxu0 %v664
    %v933 = vpop.f32.mrf.mxu0
    %v934 = vadd.f32 %v565, %v933
    %v935 = vpop.f32.mrf.mxu0
    %v936 = vpop.f32.mrf.mxu0
    %v937 = vadd.f32 %v565, %v936
    %v938 = vpop.f32.mrf.mxu0
    %939 = vmatprep.mubr.bf16.mxu0 0
    %940 = vmatmul.mubr.bf16.gmra.mxu0 %v667
    %v941 = vpop.f32.mrf.mxu0
    %v942 = vadd.f32 %v565, %v941
    %v943 = vpop.f32.mrf.mxu0
    %v944 = vpop.f32.mrf.mxu0
    %v945 = vadd.f32 %v565, %v944
    %v946 = vpop.f32.mrf.mxu0
    %947 = vmatprep.mubr.bf16.mxu0 0
    %948 = vmatmul.mubr.bf16.gmra.mxu0 %v670
    %v949 = vpop.f32.mrf.mxu0
    %v950 = vadd.f32 %v565, %v949
    %v951 = vpop.f32.mrf.mxu0
    %v952 = vpop.f32.mrf.mxu0
    %v953 = vadd.f32 %v565, %v952
    %v954 = vpop.f32.mrf.mxu0
    %955 = vmatprep.mubr.bf16.mxu0 0
    %956 = vmatmul.mubr.bf16.gmra.mxu0 %v673
    %v957 = vpop.f32.mrf.mxu0
    %v958 = vadd.f32 %v565, %v957
    %v959 = vpop.f32.mrf.mxu0
    %v960 = vpop.f32.mrf.mxu0
    %v961 = vadd.f32 %v565, %v960
    %v962 = vpop.f32.mrf.mxu0
    %963 = vdwg.mxu0
    %v964 = vmax.f32 %v710, 0.0
    %v965 = vmax.f32 %v713, 0.0
    %v966 = vmax.f32 %v718, 0.0
    %v967 = vmax.f32 %v721, 0.0
    %v968 = vmax.f32 %v726, 0.0
    %v969 = vmax.f32 %v729, 0.0
    %v970 = vmax.f32 %v734, 0.0
    %v971 = vmax.f32 %v737, 0.0
    %v972 = vmax.f32 %v742, 0.0
    %v973 = vmax.f32 %v745, 0.0
    %v974 = vmax.f32 %v750, 0.0
    %v975 = vmax.f32 %v753, 0.0
    %v976 = vmax.f32 %v758, 0.0
    %v977 = vmax.f32 %v761, 0.0
    %v978 = vmax.f32 %v766, 0.0
    %v979 = vmax.f32 %v769, 0.0
    %v980 = vmax.f32 %v774, 0.0
    %v981 = vmax.f32 %v777, 0.0
    %v982 = vmax.f32 %v782, 0.0
    %v983 = vmax.f32 %v785, 0.0
    %v984 = vmax.f32 %v790, 0.0
    %v985 = vmax.f32 %v793, 0.0
    %v986 = vmax.f32 %v798, 0.0
    %v987 = vmax.f32 %v801, 0.0
    %v988 = vmax.f32 %v806, 0.0
    %v989 = vmax.f32 %v809, 0.0
    %v990 = vmax.f32 %v814, 0.0
    %v991 = vmax.f32 %v817, 0.0
    %v992 = vmax.f32 %v822, 0.0
    %v993 = vmax.f32 %v825, 0.0
    %v994 = vmax.f32 %v830, 0.0
    %v995 = vmax.f32 %v833, 0.0
    %v996 = vmax.f32 %v838, 0.0
    %v997 = vmax.f32 %v841, 0.0
    %v998 = vmax.f32 %v846, 0.0
    %v999 = vmax.f32 %v849, 0.0
    %v1000 = vmax.f32 %v854, 0.0
    %v1001 = vmax.f32 %v857, 0.0
    %v1002 = vmax.f32 %v862, 0.0
    %v1003 = vmax.f32 %v865, 0.0
    %v1004 = vmax.f32 %v870, 0.0
    %v1005 = vmax.f32 %v873, 0.0
    %v1006 = vmax.f32 %v878, 0.0
    %v1007 = vmax.f32 %v881, 0.0
    %v1008 = vmax.f32 %v886, 0.0
    %v1009 = vmax.f32 %v889, 0.0
    %v1010 = vmax.f32 %v894, 0.0
    %v1011 = vmax.f32 %v897, 0.0
    %v1012 = vmax.f32 %v902, 0.0
    %v1013 = vmax.f32 %v905, 0.0
    %v1014 = vmax.f32 %v910, 0.0
    %v1015 = vmax.f32 %v913, 0.0
    %v1016 = vmax.f32 %v918, 0.0
    %v1017 = vmax.f32 %v921, 0.0
    %v1018 = vmax.f32 %v926, 0.0
    %v1019 = vmax.f32 %v929, 0.0
    %v1020 = vmax.f32 %v934, 0.0
    %v1021 = vmax.f32 %v937, 0.0
    %v1022 = vmax.f32 %v942, 0.0
    %v1023 = vmax.f32 %v945, 0.0
    %v1024 = vmax.f32 %v950, 0.0
    %v1025 = vmax.f32 %v953, 0.0
    %v1026 = vmax.f32 %v958, 0.0
    %v1027 = vmax.f32 %v961, 0.0
    %v1028 = vpack.c.bf16 %v965, %v964
    %v1029 = vpack.c.bf16 %v967, %v966
    %v1030 = vpack.c.bf16 %v969, %v968
    %v1031 = vpack.c.bf16 %v971, %v970
    %v1032 = vpack.c.bf16 %v973, %v972
    %v1033 = vpack.c.bf16 %v975, %v974
    %v1034 = vpack.c.bf16 %v977, %v976
    %v1035 = vpack.c.bf16 %v979, %v978
    %v1036 = vpack.c.bf16 %v981, %v980
    %v1037 = vpack.c.bf16 %v983, %v982
    %v1038 = vpack.c.bf16 %v985, %v984
    %v1039 = vpack.c.bf16 %v987, %v986
    %v1040 = vpack.c.bf16 %v989, %v988
    %v1041 = vpack.c.bf16 %v991, %v990
    %v1042 = vpack.c.bf16 %v993, %v992
    %v1043 = vpack.c.bf16 %v995, %v994
    %v1044 = vpack.c.bf16 %v997, %v996
    %v1045 = vpack.c.bf16 %v999, %v998
    %v1046 = vpack.c.bf16 %v1001, %v1000
    %v1047 = vpack.c.bf16 %v1003, %v1002
    %v1048 = vpack.c.bf16 %v1005, %v1004
    %v1049 = vpack.c.bf16 %v1007, %v1006
    %v1050 = vpack.c.bf16 %v1009, %v1008
    %v1051 = vpack.c.bf16 %v1011, %v1010
    %v1052 = vpack.c.bf16 %v1013, %v1012
    %v1053 = vpack.c.bf16 %v1015, %v1014
    %v1054 = vpack.c.bf16 %v1017, %v1016
    %v1055 = vpack.c.bf16 %v1019, %v1018
    %v1056 = vpack.c.bf16 %v1021, %v1020
    %v1057 = vpack.c.bf16 %v1023, %v1022
    %v1058 = vpack.c.bf16 %v1025, %v1024
    %v1059 = vpack.c.bf16 %v1027, %v1026
    %v1060 = vld [vmem:[#allocation5] sm:$0xf]
    %v1061 = vld [vmem:[#allocation5 + $0x4] sm:$0xf]
    %v1062 = vld [vmem:[#allocation5 + $0x8] sm:$0xf]
    %v1063 = vld [vmem:[#allocation5 + $0xc] sm:$0xf]
    %v1064 = vld [vmem:[#allocation5 + $0x10] sm:$0xf]
    %v1065 = vld [vmem:[#allocation5 + $0x14] sm:$0xf]
    %v1066 = vld [vmem:[#allocation5 + $0x18] sm:$0xf]
    %v1067 = vld [vmem:[#allocation5 + $0x1c] sm:$0xf]
    %v1068 = vld [vmem:[#allocation5 + $0x20] sm:$0xf]
    %v1069 = vld [vmem:[#allocation5 + $0x24] sm:$0xf]
    %v1070 = vld [vmem:[#allocation5 + $0x28] sm:$0xf]
    %v1071 = vld [vmem:[#allocation5 + $0x2c] sm:$0xf]
    %v1072 = vld [vmem:[#allocation5 + $0x30] sm:$0xf]
    %v1073 = vld [vmem:[#allocation5 + $0x34] sm:$0xf]
    %v1074 = vld [vmem:[#allocation5 + $0x38] sm:$0xf]
    %v1075 = vld [vmem:[#allocation5 + $0x3c] sm:$0xf]
    %v1076 = vld [vmem:[%s6] sm:$0x1]
    %v1078 = vlaneseq
    %v1079 = vshrl.u32 %v1078, 7
    %v1080 = vsub.s32 0, %v1079
    %v1081 = vrot.slane %v1076, %v1080
    %v1099 = vunpack.c.l.b16 %v1060
    %v1100 = vunpack.c.l.b16 %v1061
    %v1101 = vunpack.c.l.b16 %v1062
    %v1102 = vunpack.c.l.b16 %v1063
    %v1103 = vunpack.c.l.b16 %v1064
    %v1104 = vunpack.c.l.b16 %v1065
    %v1105 = vunpack.c.l.b16 %v1066
    %v1106 = vunpack.c.l.b16 %v1067
    %v1107 = vunpack.c.l.b16 %v1068
    %v1108 = vunpack.c.l.b16 %v1069
    %v1109 = vunpack.c.l.b16 %v1070
    %v1110 = vunpack.c.l.b16 %v1071
    %v1111 = vunpack.c.l.b16 %v1072
    %v1112 = vunpack.c.l.b16 %v1073
    %v1113 = vunpack.c.l.b16 %v1074
    %v1114 = vunpack.c.l.b16 %v1075
    %v1115 = vpack.c.b16 %v1100, %v1099
    %v1116 = vpack.c.b16 %v1102, %v1101
    %v1117 = vpack.c.b16 %v1104, %v1103
    %v1118 = vpack.c.b16 %v1106, %v1105
    %v1119 = vpack.c.b16 %v1108, %v1107
    %v1120 = vpack.c.b16 %v1110, %v1109
    %v1121 = vpack.c.b16 %v1112, %v1111
    %v1122 = vpack.c.b16 %v1114, %v1113
    %1131 = vmatprep.subr.bf16.mxu0 0
    %1132 = vmatpush1.bf16.msra.mxu0 %v1122
    %1133 = vmatprep.subr.bf16.mxu0 0
    %1134 = vmatpush1.bf16.msra.mxu0 %v1121
    %1135 = vmatprep.subr.bf16.mxu0 0
    %1136 = vmatpush1.bf16.msra.mxu0 %v1120
    %1137 = vmatprep.subr.bf16.mxu0 0
    %1138 = vmatpush1.bf16.msra.mxu0 %v1119
    %1139 = vmatprep.subr.bf16.mxu0 0
    %1140 = vmatpush1.bf16.msra.mxu0 %v1118
    %1141 = vmatprep.subr.bf16.mxu0 0
    %1142 = vmatpush1.bf16.msra.mxu0 %v1117
    %1143 = vmatprep.subr.bf16.mxu0 0
    %1144 = vmatpush1.bf16.msra.mxu0 %v1116
    %1145 = vmatprep.subr.bf16.mxu0 0
    %1146 = vmatpush1.bf16.msra.mxu0 %v1115
    %1147 = vmatprep.subr.bf16.mxu0 0
    %1148 = vmatpush2.bf16.msra.mxu0 0
    %1149 = vmatprep.subr.bf16.mxu0 0
    %1150 = vmatpush2.bf16.msra.mxu0 0
    %1151 = vmatprep.subr.bf16.mxu0 0
    %1152 = vmatpush2.bf16.msra.mxu0 0
    %1153 = vmatprep.subr.bf16.mxu0 0
    %1154 = vmatpush2.bf16.msra.mxu0 0
    %1155 = vmatprep.subr.bf16.mxu0 0
    %1156 = vmatpush2.bf16.msra.mxu0 0
    %1157 = vmatprep.subr.bf16.mxu0 0
    %1158 = vmatpush2.bf16.msra.mxu0 0
    %1159 = vmatprep.subr.bf16.mxu0 0
    %1160 = vmatpush2.bf16.msra.mxu0 0
    %1161 = vmatprep.subr.bf16.mxu0 0
    %1162 = vmatpush2.bf16.msra.mxu0 0
    %1163 = vmatprep.mubr.bf16.mxu0 0
    %1164 = vmatmul.mubr.bf16.gmra.mxu0 %v1028
    %v1165 = vpop.f32.mrf.mxu0
    %v1166 = vadd.f32 %v1081, %v1165
    %v1167 = vpop.f32.mrf.mxu0
    %v1168 = vpop.f32.mrf.mxu0
    %v1169 = vadd.f32 %v1081, %v1168
    %v1170 = vpop.f32.mrf.mxu0
    %1171 = vmatprep.mubr.bf16.mxu0 0
    %1172 = vmatmul.mubr.bf16.gmra.mxu0 %v1029
    %v1173 = vpop.f32.mrf.mxu0
    %v1174 = vadd.f32 %v1081, %v1173
    %v1175 = vpop.f32.mrf.mxu0
    %v1176 = vpop.f32.mrf.mxu0
    %v1177 = vadd.f32 %v1081, %v1176
    %v1178 = vpop.f32.mrf.mxu0
    %1179 = vmatprep.mubr.bf16.mxu0 0
    %1180 = vmatmul.mubr.bf16.gmra.mxu0 %v1030
    %v1181 = vpop.f32.mrf.mxu0
    %v1182 = vadd.f32 %v1081, %v1181
    %v1183 = vpop.f32.mrf.mxu0
    %v1184 = vpop.f32.mrf.mxu0
    %v1185 = vadd.f32 %v1081, %v1184
    %v1186 = vpop.f32.mrf.mxu0
    %1187 = vmatprep.mubr.bf16.mxu0 0
    %1188 = vmatmul.mubr.bf16.gmra.mxu0 %v1031
    %v1189 = vpop.f32.mrf.mxu0
    %v1190 = vadd.f32 %v1081, %v1189
    %v1191 = vpop.f32.mrf.mxu0
    %v1192 = vpop.f32.mrf.mxu0
    %v1193 = vadd.f32 %v1081, %v1192
    %v1194 = vpop.f32.mrf.mxu0
    %1195 = vmatprep.mubr.bf16.mxu0 0
    %1196 = vmatmul.mubr.bf16.gmra.mxu0 %v1032
    %v1197 = vpop.f32.mrf.mxu0
    %v1198 = vadd.f32 %v1081, %v1197
    %v1199 = vpop.f32.mrf.mxu0
    %v1200 = vpop.f32.mrf.mxu0
    %v1201 = vadd.f32 %v1081, %v1200
    %v1202 = vpop.f32.mrf.mxu0
    %1203 = vmatprep.mubr.bf16.mxu0 0
    %1204 = vmatmul.mubr.bf16.gmra.mxu0 %v1033
    %v1205 = vpop.f32.mrf.mxu0
    %v1206 = vadd.f32 %v1081, %v1205
    %v1207 = vpop.f32.mrf.mxu0
    %v1208 = vpop.f32.mrf.mxu0
    %v1209 = vadd.f32 %v1081, %v1208
    %v1210 = vpop.f32.mrf.mxu0
    %1211 = vmatprep.mubr.bf16.mxu0 0
    %1212 = vmatmul.mubr.bf16.gmra.mxu0 %v1034
    %v1213 = vpop.f32.mrf.mxu0
    %v1214 = vadd.f32 %v1081, %v1213
    %v1215 = vpop.f32.mrf.mxu0
    %v1216 = vpop.f32.mrf.mxu0
    %v1217 = vadd.f32 %v1081, %v1216
    %v1218 = vpop.f32.mrf.mxu0
    %1219 = vmatprep.mubr.bf16.mxu0 0
    %1220 = vmatmul.mubr.bf16.gmra.mxu0 %v1035
    %v1221 = vpop.f32.mrf.mxu0
    %v1222 = vadd.f32 %v1081, %v1221
    %v1223 = vpop.f32.mrf.mxu0
    %v1224 = vpop.f32.mrf.mxu0
    %v1225 = vadd.f32 %v1081, %v1224
    %v1226 = vpop.f32.mrf.mxu0
    %1227 = vmatprep.mubr.bf16.mxu0 0
    %1228 = vmatmul.mubr.bf16.gmra.mxu0 %v1036
    %v1229 = vpop.f32.mrf.mxu0
    %v1230 = vadd.f32 %v1081, %v1229
    %v1231 = vpop.f32.mrf.mxu0
    %v1232 = vpop.f32.mrf.mxu0
    %v1233 = vadd.f32 %v1081, %v1232
    %v1234 = vpop.f32.mrf.mxu0
    %1235 = vmatprep.mubr.bf16.mxu0 0
    %1236 = vmatmul.mubr.bf16.gmra.mxu0 %v1037
    %v1237 = vpop.f32.mrf.mxu0
    %v1238 = vadd.f32 %v1081, %v1237
    %v1239 = vpop.f32.mrf.mxu0
    %v1240 = vpop.f32.mrf.mxu0
    %v1241 = vadd.f32 %v1081, %v1240
    %v1242 = vpop.f32.mrf.mxu0
    %1243 = vmatprep.mubr.bf16.mxu0 0
    %1244 = vmatmul.mubr.bf16.gmra.mxu0 %v1038
    %v1245 = vpop.f32.mrf.mxu0
    %v1246 = vadd.f32 %v1081, %v1245
    %v1247 = vpop.f32.mrf.mxu0
    %v1248 = vpop.f32.mrf.mxu0
    %v1249 = vadd.f32 %v1081, %v1248
    %v1250 = vpop.f32.mrf.mxu0
    %1251 = vmatprep.mubr.bf16.mxu0 0
    %1252 = vmatmul.mubr.bf16.gmra.mxu0 %v1039
    %v1253 = vpop.f32.mrf.mxu0
    %v1254 = vadd.f32 %v1081, %v1253
    %v1255 = vpop.f32.mrf.mxu0
    %v1256 = vpop.f32.mrf.mxu0
    %v1257 = vadd.f32 %v1081, %v1256
    %v1258 = vpop.f32.mrf.mxu0
    %1259 = vmatprep.mubr.bf16.mxu0 0
    %1260 = vmatmul.mubr.bf16.gmra.mxu0 %v1040
    %v1261 = vpop.f32.mrf.mxu0
    %v1262 = vadd.f32 %v1081, %v1261
    %v1263 = vpop.f32.mrf.mxu0
    %v1264 = vpop.f32.mrf.mxu0
    %v1265 = vadd.f32 %v1081, %v1264
    %v1266 = vpop.f32.mrf.mxu0
    %1267 = vmatprep.mubr.bf16.mxu0 0
    %1268 = vmatmul.mubr.bf16.gmra.mxu0 %v1041
    %v1269 = vpop.f32.mrf.mxu0
    %v1270 = vadd.f32 %v1081, %v1269
    %v1271 = vpop.f32.mrf.mxu0
    %v1272 = vpop.f32.mrf.mxu0
    %v1273 = vadd.f32 %v1081, %v1272
    %v1274 = vpop.f32.mrf.mxu0
    %1275 = vmatprep.mubr.bf16.mxu0 0
    %1276 = vmatmul.mubr.bf16.gmra.mxu0 %v1042
    %v1277 = vpop.f32.mrf.mxu0
    %v1278 = vadd.f32 %v1081, %v1277
    %v1279 = vpop.f32.mrf.mxu0
    %v1280 = vpop.f32.mrf.mxu0
    %v1281 = vadd.f32 %v1081, %v1280
    %v1282 = vpop.f32.mrf.mxu0
    %1283 = vmatprep.mubr.bf16.mxu0 0
    %1284 = vmatmul.mubr.bf16.gmra.mxu0 %v1043
    %v1285 = vpop.f32.mrf.mxu0
    %v1286 = vadd.f32 %v1081, %v1285
    %v1287 = vpop.f32.mrf.mxu0
    %v1288 = vpop.f32.mrf.mxu0
    %v1289 = vadd.f32 %v1081, %v1288
    %v1290 = vpop.f32.mrf.mxu0
    %1291 = vmatprep.mubr.bf16.mxu0 0
    %1292 = vmatmul.mubr.bf16.gmra.mxu0 %v1044
    %v1293 = vpop.f32.mrf.mxu0
    %v1294 = vadd.f32 %v1081, %v1293
    %v1295 = vpop.f32.mrf.mxu0
    %v1296 = vpop.f32.mrf.mxu0
    %v1297 = vadd.f32 %v1081, %v1296
    %v1298 = vpop.f32.mrf.mxu0
    %1299 = vmatprep.mubr.bf16.mxu0 0
    %1300 = vmatmul.mubr.bf16.gmra.mxu0 %v1045
    %v1301 = vpop.f32.mrf.mxu0
    %v1302 = vadd.f32 %v1081, %v1301
    %v1303 = vpop.f32.mrf.mxu0
    %v1304 = vpop.f32.mrf.mxu0
    %v1305 = vadd.f32 %v1081, %v1304
    %v1306 = vpop.f32.mrf.mxu0
    %1307 = vmatprep.mubr.bf16.mxu0 0
    %1308 = vmatmul.mubr.bf16.gmra.mxu0 %v1046
    %v1309 = vpop.f32.mrf.mxu0
    %v1310 = vadd.f32 %v1081, %v1309
    %v1311 = vpop.f32.mrf.mxu0
    %v1312 = vpop.f32.mrf.mxu0
    %v1313 = vadd.f32 %v1081, %v1312
    %v1314 = vpop.f32.mrf.mxu0
    %1315 = vmatprep.mubr.bf16.mxu0 0
    %1316 = vmatmul.mubr.bf16.gmra.mxu0 %v1047
    %v1317 = vpop.f32.mrf.mxu0
    %v1318 = vadd.f32 %v1081, %v1317
    %v1319 = vpop.f32.mrf.mxu0
    %v1320 = vpop.f32.mrf.mxu0
    %v1321 = vadd.f32 %v1081, %v1320
    %v1322 = vpop.f32.mrf.mxu0
    %1323 = vmatprep.mubr.bf16.mxu0 0
    %1324 = vmatmul.mubr.bf16.gmra.mxu0 %v1048
    %v1325 = vpop.f32.mrf.mxu0
    %v1326 = vadd.f32 %v1081, %v1325
    %v1327 = vpop.f32.mrf.mxu0
    %v1328 = vpop.f32.mrf.mxu0
    %v1329 = vadd.f32 %v1081, %v1328
    %v1330 = vpop.f32.mrf.mxu0
    %1331 = vmatprep.mubr.bf16.mxu0 0
    %1332 = vmatmul.mubr.bf16.gmra.mxu0 %v1049
    %v1333 = vpop.f32.mrf.mxu0
    %v1334 = vadd.f32 %v1081, %v1333
    %v1335 = vpop.f32.mrf.mxu0
    %v1336 = vpop.f32.mrf.mxu0
    %v1337 = vadd.f32 %v1081, %v1336
    %v1338 = vpop.f32.mrf.mxu0
    %1339 = vmatprep.mubr.bf16.mxu0 0
    %1340 = vmatmul.mubr.bf16.gmra.mxu0 %v1050
    %v1341 = vpop.f32.mrf.mxu0
    %v1342 = vadd.f32 %v1081, %v1341
    %v1343 = vpop.f32.mrf.mxu0
    %v1344 = vpop.f32.mrf.mxu0
    %v1345 = vadd.f32 %v1081, %v1344
    %v1346 = vpop.f32.mrf.mxu0
    %1347 = vmatprep.mubr.bf16.mxu0 0
    %1348 = vmatmul.mubr.bf16.gmra.mxu0 %v1051
    %v1349 = vpop.f32.mrf.mxu0
    %v1350 = vadd.f32 %v1081, %v1349
    %v1351 = vpop.f32.mrf.mxu0
    %v1352 = vpop.f32.mrf.mxu0
    %v1353 = vadd.f32 %v1081, %v1352
    %v1354 = vpop.f32.mrf.mxu0
    %1355 = vmatprep.mubr.bf16.mxu0 0
    %1356 = vmatmul.mubr.bf16.gmra.mxu0 %v1052
    %v1357 = vpop.f32.mrf.mxu0
    %v1358 = vadd.f32 %v1081, %v1357
    %v1359 = vpop.f32.mrf.mxu0
    %v1360 = vpop.f32.mrf.mxu0
    %v1361 = vadd.f32 %v1081, %v1360
    %v1362 = vpop.f32.mrf.mxu0
    %1363 = vmatprep.mubr.bf16.mxu0 0
    %1364 = vmatmul.mubr.bf16.gmra.mxu0 %v1053
    %v1365 = vpop.f32.mrf.mxu0
    %v1366 = vadd.f32 %v1081, %v1365
    %v1367 = vpop.f32.mrf.mxu0
    %v1368 = vpop.f32.mrf.mxu0
    %v1369 = vadd.f32 %v1081, %v1368
    %v1370 = vpop.f32.mrf.mxu0
    %1371 = vmatprep.mubr.bf16.mxu0 0
    %1372 = vmatmul.mubr.bf16.gmra.mxu0 %v1054
    %v1373 = vpop.f32.mrf.mxu0
    %v1374 = vadd.f32 %v1081, %v1373
    %v1375 = vpop.f32.mrf.mxu0
    %v1376 = vpop.f32.mrf.mxu0
    %v1377 = vadd.f32 %v1081, %v1376
    %v1378 = vpop.f32.mrf.mxu0
    %1379 = vmatprep.mubr.bf16.mxu0 0
    %1380 = vmatmul.mubr.bf16.gmra.mxu0 %v1055
    %v1381 = vpop.f32.mrf.mxu0
    %v1382 = vadd.f32 %v1081, %v1381
    %v1383 = vpop.f32.mrf.mxu0
    %v1384 = vpop.f32.mrf.mxu0
    %v1385 = vadd.f32 %v1081, %v1384
    %v1386 = vpop.f32.mrf.mxu0
    %1387 = vmatprep.mubr.bf16.mxu0 0
    %1388 = vmatmul.mubr.bf16.gmra.mxu0 %v1056
    %v1389 = vpop.f32.mrf.mxu0
    %v1390 = vadd.f32 %v1081, %v1389
    %v1391 = vpop.f32.mrf.mxu0
    %v1392 = vpop.f32.mrf.mxu0
    %v1393 = vadd.f32 %v1081, %v1392
    %v1394 = vpop.f32.mrf.mxu0
    %1395 = vmatprep.mubr.bf16.mxu0 0
    %1396 = vmatmul.mubr.bf16.gmra.mxu0 %v1057
    %v1397 = vpop.f32.mrf.mxu0
    %v1398 = vadd.f32 %v1081, %v1397
    %v1399 = vpop.f32.mrf.mxu0
    %v1400 = vpop.f32.mrf.mxu0
    %v1401 = vadd.f32 %v1081, %v1400
    %v1402 = vpop.f32.mrf.mxu0
    %1403 = vmatprep.mubr.bf16.mxu0 0
    %1404 = vmatmul.mubr.bf16.gmra.mxu0 %v1058
    %v1405 = vpop.f32.mrf.mxu0
    %v1406 = vadd.f32 %v1081, %v1405
    %v1407 = vpop.f32.mrf.mxu0
    %v1408 = vpop.f32.mrf.mxu0
    %v1409 = vadd.f32 %v1081, %v1408
    %v1410 = vpop.f32.mrf.mxu0
    %1411 = vmatprep.mubr.bf16.mxu0 0
    %1412 = vmatmul.mubr.bf16.gmra.mxu0 %v1059
    %v1413 = vpop.f32.mrf.mxu0
    %v1414 = vadd.f32 %v1081, %v1413
    %v1415 = vpop.f32.mrf.mxu0
    %v1416 = vpop.f32.mrf.mxu0
    %v1417 = vadd.f32 %v1081, %v1416
    %v1418 = vpop.f32.mrf.mxu0
    %1419 = vdwg.mxu0
    %1420 = vxpose.xlu0.b32.start [1/16] %v1166, 128
    %1421 = vxpose.xlu0.b32.cont [2/16] %v1169, 128
    %1422 = vxpose.xlu0.b32.cont [3/16] %v1174, 128
    %1423 = vxpose.xlu0.b32.cont [4/16] %v1177, 128
    %1424 = vxpose.xlu0.b32.cont [5/16] %v1182, 128
    %1425 = vxpose.xlu0.b32.cont [6/16] %v1185, 128
    %1426 = vxpose.xlu0.b32.cont [7/16] %v1190, 128
    %1427 = vxpose.xlu0.b32.cont [8/16] %v1193, 128
    %1428 = vxpose.xlu0.b32.cont [9/16] %v1198, 128
    %1429 = vxpose.xlu0.b32.cont [10/16] %v1201, 128
    %1430 = vxpose.xlu0.b32.cont [11/16] %v1206, 128
    %1431 = vxpose.xlu0.b32.cont [12/16] %v1209, 128
    %1432 = vxpose.xlu0.b32.cont [13/16] %v1214, 128
    %1433 = vxpose.xlu0.b32.cont [14/16] %v1217, 128
    %1434 = vxpose.xlu0.b32.cont [15/16] %v1222, 128
    %1435 = vxpose.xlu0.b32.end [16/16] %v1225, 128
    %v1436 = vpop.trf.xlu0
    %v1437 = vpop.trf.xlu0
    %v1438 = vpop.trf.xlu0
    %v1439 = vpop.trf.xlu0
    %v1440 = vpop.trf.xlu0
    %v1441 = vpop.trf.xlu0
    %v1442 = vpop.trf.xlu0
    %v1443 = vpop.trf.xlu0
    %v1444 = vpop.trf.xlu0
    %v1445 = vpop.trf.xlu0
    %v1446 = vpop.trf.xlu0
    %v1447 = vpop.trf.xlu0
    %v1448 = vpop.trf.xlu0
    %v1449 = vpop.trf.xlu0
    %v1450 = vpop.trf.xlu0
    %v1451 = vpop.trf.xlu0
    %1452 = vxpose.xlu0.b32.start [1/16] %v1230, 128
    %1453 = vxpose.xlu0.b32.cont [2/16] %v1233, 128
    %1454 = vxpose.xlu0.b32.cont [3/16] %v1238, 128
    %1455 = vxpose.xlu0.b32.cont [4/16] %v1241, 128
    %1456 = vxpose.xlu0.b32.cont [5/16] %v1246, 128
    %1457 = vxpose.xlu0.b32.cont [6/16] %v1249, 128
    %1458 = vxpose.xlu0.b32.cont [7/16] %v1254, 128
    %1459 = vxpose.xlu0.b32.cont [8/16] %v1257, 128
    %1460 = vxpose.xlu0.b32.cont [9/16] %v1262, 128
    %1461 = vxpose.xlu0.b32.cont [10/16] %v1265, 128
    %1462 = vxpose.xlu0.b32.cont [11/16] %v1270, 128
    %1463 = vxpose.xlu0.b32.cont [12/16] %v1273, 128
    %1464 = vxpose.xlu0.b32.cont [13/16] %v1278, 128
    %1465 = vxpose.xlu0.b32.cont [14/16] %v1281, 128
    %1466 = vxpose.xlu0.b32.cont [15/16] %v1286, 128
    %1467 = vxpose.xlu0.b32.end [16/16] %v1289, 128
    %v1468 = vpop.trf.xlu0
    %v1469 = vpop.trf.xlu0
    %v1470 = vpop.trf.xlu0
    %v1471 = vpop.trf.xlu0
    %v1472 = vpop.trf.xlu0
    %v1473 = vpop.trf.xlu0
    %v1474 = vpop.trf.xlu0
    %v1475 = vpop.trf.xlu0
    %v1476 = vpop.trf.xlu0
    %v1477 = vpop.trf.xlu0
    %v1478 = vpop.trf.xlu0
    %v1479 = vpop.trf.xlu0
    %v1480 = vpop.trf.xlu0
    %v1481 = vpop.trf.xlu0
    %v1482 = vpop.trf.xlu0
    %v1483 = vpop.trf.xlu0
    %1484 = vst [vmem:[#allocation7] sm:$0xff] %v1436
    %1485 = vst [vmem:[#allocation7 + $0x8] sm:$0xff] %v1468
    %1486 = vst [vmem:[#allocation7 + $0x10] sm:$0xff] %v1437
    %1487 = vst [vmem:[#allocation7 + $0x18] sm:$0xff] %v1469
    %1488 = vxpose.xlu0.b32.start [1/16] %v1294, 128
    %1489 = vxpose.xlu0.b32.cont [2/16] %v1297, 128
    %1490 = vxpose.xlu0.b32.cont [3/16] %v1302, 128
    %1491 = vxpose.xlu0.b32.cont [4/16] %v1305, 128
    %1492 = vxpose.xlu0.b32.cont [5/16] %v1310, 128
    %1493 = vxpose.xlu0.b32.cont [6/16] %v1313, 128
    %1494 = vxpose.xlu0.b32.cont [7/16] %v1318, 128
    %1495 = vxpose.xlu0.b32.cont [8/16] %v1321, 128
    %1496 = vxpose.xlu0.b32.cont [9/16] %v1326, 128
    %1497 = vxpose.xlu0.b32.cont [10/16] %v1329, 128
    %1498 = vxpose.xlu0.b32.cont [11/16] %v1334, 128
    %1499 = vxpose.xlu0.b32.cont [12/16] %v1337, 128
    %1500 = vxpose.xlu0.b32.cont [13/16] %v1342, 128
    %1501 = vxpose.xlu0.b32.cont [14/16] %v1345, 128
    %1502 = vxpose.xlu0.b32.cont [15/16] %v1350, 128
    %1503 = vxpose.xlu0.b32.end [16/16] %v1353, 128
    %v1504 = vpop.trf.xlu0
    %v1505 = vpop.trf.xlu0
    %v1506 = vpop.trf.xlu0
    %v1507 = vpop.trf.xlu0
    %v1508 = vpop.trf.xlu0
    %v1509 = vpop.trf.xlu0
    %v1510 = vpop.trf.xlu0
    %v1511 = vpop.trf.xlu0
    %v1512 = vpop.trf.xlu0
    %v1513 = vpop.trf.xlu0
    %v1514 = vpop.trf.xlu0
    %v1515 = vpop.trf.xlu0
    %v1516 = vpop.trf.xlu0
    %v1517 = vpop.trf.xlu0
    %v1518 = vpop.trf.xlu0
    %v1519 = vpop.trf.xlu0
    %1520 = vxpose.xlu0.b32.start [1/16] %v1358, 128
    %1521 = vxpose.xlu0.b32.cont [2/16] %v1361, 128
    %1522 = vxpose.xlu0.b32.cont [3/16] %v1366, 128
    %1523 = vxpose.xlu0.b32.cont [4/16] %v1369, 128
    %1524 = vxpose.xlu0.b32.cont [5/16] %v1374, 128
    %1525 = vxpose.xlu0.b32.cont [6/16] %v1377, 128
    %1526 = vxpose.xlu0.b32.cont [7/16] %v1382, 128
    %1527 = vxpose.xlu0.b32.cont [8/16] %v1385, 128
    %1528 = vxpose.xlu0.b32.cont [9/16] %v1390, 128
    %1529 = vxpose.xlu0.b32.cont [10/16] %v1393, 128
    %1530 = vxpose.xlu0.b32.cont [11/16] %v1398, 128
    %1531 = vxpose.xlu0.b32.cont [12/16] %v1401, 128
    %1532 = vxpose.xlu0.b32.cont [13/16] %v1406, 128
    %1533 = vxpose.xlu0.b32.cont [14/16] %v1409, 128
    %1534 = vxpose.xlu0.b32.cont [15/16] %v1414, 128
    %1535 = vxpose.xlu0.b32.end [16/16] %v1417, 128
    %v1536 = vpop.trf.xlu0
    %v1537 = vpop.trf.xlu0
    %v1538 = vpop.trf.xlu0
    %v1539 = vpop.trf.xlu0
    %v1540 = vpop.trf.xlu0
    %v1541 = vpop.trf.xlu0
    %v1542 = vpop.trf.xlu0
    %v1543 = vpop.trf.xlu0
    %v1544 = vpop.trf.xlu0
    %v1545 = vpop.trf.xlu0
    %v1546 = vpop.trf.xlu0
    %v1547 = vpop.trf.xlu0
    %v1548 = vpop.trf.xlu0
    %v1549 = vpop.trf.xlu0
    %v1550 = vpop.trf.xlu0
    %v1551 = vpop.trf.xlu0
    %s1552 = scalar_lea.vmem [#allocation7], 32
    %1553 = vst [vmem:[%s1552] sm:$0xff] %v1504
    %1554 = vst [vmem:[%s1552 + $0x8] sm:$0xff] %v1536
    %1555 = vst [vmem:[%s1552 + $0x10] sm:$0xff] %v1505
    %1556 = vst [vmem:[%s1552 + $0x18] sm:$0xff] %v1537
    // Predicated region
    $region38: #{tpu_custom_call.1} parent=1 // pred_check
      _
    $region39: #{tpu_custom_call.1} parent=1 // pred_check_branch
      %1558 = sbr.rel (0) target = $region41
    $region40: #{tpu_custom_call.1} parent=1 // pred_region
      %s1560 = ssub.s32 1024, 1024
      %1561 = vsyncadd [#allocation4], %s1560
      %s1562 = sshll.u32 [#allocation7], 4
      %s1563 = int_to_ptr.vmem [resolvable:$true] %s1562
      %1568 = dma.vmem_to_hbm [thread:$0]  %s1563, 1024, %s7, [#allocation4], 256, 256, 16
    $region41: #{tpu_custom_call.1} parent=1 // pred_fallthru
      _
    // Predicated region
    $region42: #{tpu_custom_call.1} parent=1 // pred_check
      _
    $region43: #{tpu_custom_call.1} parent=1 // pred_check_branch
      %1570 = sbr.rel (0) target = $region45
    $region44: #{tpu_custom_call.1} parent=1 // pred_region
      %1571 = dma.done [#allocation4], 1024
    $region45: #{tpu_custom_call.1} parent=1 // pred_fallthru
      _
    %1572 = vsyncpa [#allocation3], 1
    %1573 = vsyncpa [#allocation6], 1
    %1574 = vsyncpa [#allocation4], 1

</llo_original>
